<compile_context>
chip_gen: v7x
topology: tpu7x:2x2x1
jax: 0.10.0
libtpu: 0.0.40
codegen_flags: <defaults>
</compile_context>

<pallas_src>
import functools

import jax
import jax.numpy as jnp
from jax import lax
from jax.experimental import pallas as pl
from jax.experimental.pallas import tpu as pltpu

EPS = 1e-5
VMEM_LIMIT = 32 * 1024 * 1024   # safe scoped-VMEM limit on v5e/v6e/v7x


def _compiler_params():
    return pltpu.CompilerParams(dimension_semantics=("parallel",),
                                vmem_limit_bytes=VMEM_LIMIT)


def _pick_row_tile(m, target):
    """Largest row tile <= target that divides m exactly (so the BN stats never
    see padding rows).  Prefers multiples of 8 for sublane alignment."""
    if m <= target:
        return m
    t = (target // 8) * 8
    while t >= 8:
        if m % t == 0:
            return t
        t -= 8
    return m


# ----------------------------- kernels ---------------------------------------
def _mm_stats_kernel(x_ref, w_ref, z_ref, st_ref):
    """z = x @ w (bf16 MXU operands, f32 accumulate) + per-tile (sum, sumsq)."""
    z = jnp.dot(x_ref[...].astype(jnp.bfloat16), w_ref[...],
                preferred_element_type=jnp.float32)
    z_ref[...] = z.astype(z_ref.dtype)
    st_ref[0, 0:1, :] = jnp.sum(z, axis=0, keepdims=True)
    st_ref[0, 1:2, :] = jnp.sum(z * z, axis=0, keepdims=True)


def _act_mm_stats_kernel(x_ref, s_ref, t_ref, w_ref, z_ref, st_ref):
    """Folded-BN (scale/shift) + ReLU applied on read, then matmul + stats."""
    y = jnp.maximum(x_ref[...].astype(jnp.float32) * s_ref[...] + t_ref[...], 0.0)
    z = jnp.dot(y.astype(jnp.bfloat16), w_ref[...],
                preferred_element_type=jnp.float32)
    z_ref[...] = z.astype(z_ref.dtype)
    st_ref[0, 0:1, :] = jnp.sum(z, axis=0, keepdims=True)
    st_ref[0, 1:2, :] = jnp.sum(z * z, axis=0, keepdims=True)


def _conv3x3_kernel(z1_ref, s_ref, t_ref, w2_ref, ml_ref, mr_ref,
                    z2_ref, st_ref, pad_ref, *, taps, hw, off):
    """3x3 conv (pad=1; stride baked into the static `taps` plan) on one image.

    z1_ref : (1, P, hw, Cin)  pre-BN conv1 output (phase-split when stride=2)
    w2_ref : (9, Cin, Cout)   taps ordered ky*3+kx
    pad_ref: (P, hw + 2*off, Cin) bf16 scratch: activated image rows at offset
             `off`, zeros elsewhere.  Each tap is a contiguous 2-D slice of the
             flattened image shifted by a static amount; image-edge columns are
             zeroed with the precomputed 0/1 masks (ml/mr).
    """
    nphase = z1_ref.shape[1]
    cout = w2_ref.shape[2]
    s = s_ref[...]
    t = t_ref[...]
    pad_ref[...] = jnp.zeros_like(pad_ref)
    for p in range(nphase):
        act = jnp.maximum(z1_ref[0, p].astype(jnp.float32) * s + t, 0.0)
        pad_ref[p, off:off + hw, :] = act.astype(jnp.bfloat16)
    acc = jnp.zeros((hw, cout), jnp.float32)
    for k, (p, shift, edge) in enumerate(taps):
        tap = pad_ref[p, off + shift:off + shift + hw, :]
        if edge == "l":
            tap = tap * ml_ref[...]
        elif edge == "r":
            tap = tap * mr_ref[...]
        acc = acc + jnp.dot(tap, w2_ref[k], preferred_element_type=jnp.float32)
    z2_ref[0] = acc.astype(z2_ref.dtype)
    st_ref[0, 0:1, :] = jnp.sum(acc, axis=0, keepdims=True)
    st_ref[0, 1:2, :] = jnp.sum(acc * acc, axis=0, keepdims=True)


def _final_proj_kernel(z3_ref, s3_ref, t3_ref, zs_ref, ss_ref, ts_ref, o_ref):
    y = z3_ref[...] * s3_ref[...] + t3_ref[...]
    y = y + zs_ref[...] * ss_ref[...] + ts_ref[...]
    o_ref[...] = jnp.maximum(y, 0.0)


def _final_id_kernel(z3_ref, s3_ref, t3_ref, x_ref, o_ref):
    o_ref[...] = jnp.maximum(
        z3_ref[...] * s3_ref[...] + t3_ref[...] + x_ref[...], 0.0)


# ----------------------------- pallas_call wrappers ---------------------------
def _matmul_stats(x, w, out_dtype, row_block):
    m, cin = x.shape
    cout = w.shape[1]
    tm = _pick_row_tile(m, row_block)
    g = m // tm
    return pl.pallas_call(
        _mm_stats_kernel,
        out_shape=(jax.ShapeDtypeStruct((m, cout), out_dtype),
                   jax.ShapeDtypeStruct((g, 2, cout), jnp.float32)),
        grid=(g,),
        in_specs=[pl.BlockSpec((tm, cin), lambda i: (i, 0)),
                  pl.BlockSpec((cin, cout), lambda i: (0, 0))],
        out_specs=(pl.BlockSpec((tm, cout), lambda i: (i, 0)),
                   pl.BlockSpec((1, 2, cout), lambda i: (i, 0, 0))),
        compiler_params=_compiler_params(),
    )(x, w)


def _act_matmul_stats(x, scale, shift, w, out_dtype, row_block):
    m, cin = x.shape
    cout = w.shape[1]
    tm = _pick_row_tile(m, row_block)
    g = m // tm
    return pl.pallas_call(
        _act_mm_stats_kernel,
        out_shape=(jax.ShapeDtypeStruct((m, cout), out_dtype),
                   jax.ShapeDtypeStruct((g, 2, cout), jnp.float32)),
        grid=(g,),
        in_specs=[pl.BlockSpec((tm, cin), lambda i: (i, 0)),
                  pl.BlockSpec((1, cin), lambda i: (0, 0)),
                  pl.BlockSpec((1, cin), lambda i: (0, 0)),
                  pl.BlockSpec((cin, cout), lambda i: (0, 0))],
        out_specs=(pl.BlockSpec((tm, cout), lambda i: (i, 0)),
                   pl.BlockSpec((1, 2, cout), lambda i: (i, 0, 0))),
        compiler_params=_compiler_params(),
    )(x, scale, shift, w)


def _conv3x3(z1_img, scale, shift, w2, mask_l, mask_r, *, taps, hw, off):
    n, nphase, _, cin = z1_img.shape
    cout = w2.shape[2]
    kern = functools.partial(_conv3x3_kernel, taps=taps, hw=hw, off=off)
    return pl.pallas_call(
        kern,
        out_shape=(jax.ShapeDtypeStruct((n, hw, cout), jnp.bfloat16),
                   jax.ShapeDtypeStruct((n, 2, cout), jnp.float32)),
        grid=(n,),
        in_specs=[pl.BlockSpec((1, nphase, hw, cin), lambda i: (i, 0, 0, 0)),
                  pl.BlockSpec((1, cin), lambda i: (0, 0)),
                  pl.BlockSpec((1, cin), lambda i: (0, 0)),
                  pl.BlockSpec((9, cin, cout), lambda i: (0, 0, 0)),
                  pl.BlockSpec((hw, 1), lambda i: (0, 0)),
                  pl.BlockSpec((hw, 1), lambda i: (0, 0))],
        out_specs=(pl.BlockSpec((1, hw, cout), lambda i: (i, 0, 0)),
                   pl.BlockSpec((1, 2, cout), lambda i: (i, 0, 0))),
        scratch_shapes=[pltpu.VMEM((nphase, hw + 2 * off, cin), jnp.bfloat16)],
        compiler_params=_compiler_params(),
    )(z1_img, scale, shift, w2, mask_l, mask_r)


def _final_proj(z3, s3, t3, zsc, ssc, tsc, row_block):
    m, cout = z3.shape
    tm = _pick_row_tile(m, row_block)
    g = m // tm
    row = pl.BlockSpec((tm, cout), lambda i: (i, 0))
    vec = pl.BlockSpec((1, cout), lambda i: (0, 0))
    return pl.pallas_call(
        _final_proj_kernel,
        out_shape=jax.ShapeDtypeStruct((m, cout), jnp.float32),
        grid=(g,),
        in_specs=[row, vec, vec, row, vec, vec],
        out_specs=row,
        compiler_params=_compiler_params(),
    )(z3, s3, t3, zsc, ssc, tsc)


def _final_identity(z3, s3, t3, x_flat, row_block):
    m, cout = z3.shape
    tm = _pick_row_tile(m, row_block)
    g = m // tm
    row = pl.BlockSpec((tm, cout), lambda i: (i, 0))
    vec = pl.BlockSpec((1, cout), lambda i: (0, 0))
    return pl.pallas_call(
        _final_id_kernel,
        out_shape=jax.ShapeDtypeStruct((m, cout), jnp.float32),
        grid=(g,),
        in_specs=[row, vec, vec, row],
        out_specs=row,
        compiler_params=_compiler_params(),
    )(z3, s3, t3, x_flat)


def _fold_bn(partial_stats, m, gamma, beta):
    """Reduce per-tile (sum, sumsq) and fold BN into per-channel scale/shift."""
    s = jnp.sum(partial_stats, axis=0)                      # (2, C)
    mean = s[0] / m
    var = jnp.maximum(s[1] / m - mean * mean, 0.0)          # biased (training mode)
    inv = lax.rsqrt(var + EPS)
    scale = gamma.reshape(1, -1) * inv.reshape(1, -1)
    shift = beta.reshape(1, -1) - mean.reshape(1, -1) * scale
    return scale.astype(jnp.float32), shift.astype(jnp.float32)


# ----------------------------- forward ----------------------------------------
def block_forward(x_nchw, params, *, stride, channels_current, channels,
                  row_block=512):
    x = jnp.transpose(x_nchw, (0, 2, 3, 1)).astype(jnp.float32)   # NCHW -> NHWC
    n, h, w, cin = x.shape
    cm = params["w1"].shape[1]
    cout = channels

    w1 = params["w1"].astype(jnp.bfloat16)
    w2 = params["w2"].reshape(9, cm, cm).astype(jnp.bfloat16)     # (ky*3+kx, Cin, Cout)
    w3 = params["w3"].astype(jnp.bfloat16)

    # --- static plan for the in-kernel 3x3 conv (flat-shift taps) ------------
    if stride == 1:
        ho, wo = h, w
        hw, wmask, nphase = h * w, w, 1
        x_rows = x.reshape(n * h * w, cin)
        xph = None
        taps = tuple((0, (ky - 1) * w + (kx - 1),
                      "l" if kx == 0 else ("r" if kx == 2 else None))
                     for ky in range(3) for kx in range(3))
    else:
        assert stride == 2 and h % 2 == 0 and w % 2 == 0, \
            "stride-2 path assumes even spatial dims"
        ho, wo = h // 2, w // 2
        hw, wmask, nphase = ho * wo, wo, 4
        # space-to-batch phase reorder of x: stage-1's output then comes out
        # phase-split, and the strided shortcut read is a contiguous slice.
        xph = x.reshape(n, ho, 2, wo, 2, cin).transpose(0, 2, 4, 1, 3, 5)
        x_rows = xph.reshape(n * 4 * hw, cin)
        taps = tuple(((1 if ky != 1 else 0) * 2 + (1 if kx != 1 else 0),
                      -((wo if ky == 0 else 0) + (1 if kx == 0 else 0)),
                      "l" if kx == 0 else None)
                     for ky in range(3) for kx in range(3))
    off = wmask + 1
    kk = jnp.arange(hw, dtype=jnp.int32) % wmask
    mask_l = (kk != 0).astype(jnp.bfloat16).reshape(hw, 1)
    mask_r = (kk != wmask - 1).astype(jnp.bfloat16).reshape(hw, 1)

    # --- stage 1: conv1 (1x1) as row-tiled matmul + BN1 partial stats --------
    m1 = x_rows.shape[0]
    z1, st1 = _matmul_stats(x_rows, w1, jnp.bfloat16, row_block)
    s1, t1 = _fold_bn(st1, m1, params["g1"], params["be1"])

    # --- stage 2: in-kernel 3x3 conv (BN1+ReLU on read) + BN2 partial stats --
    z1_img = z1.reshape(n, nphase, hw, cm)
    z2, st2 = _conv3x3(z1_img, s1, t1, w2, mask_l, mask_r,
                       taps=taps, hw=hw, off=off)
    m2 = n * hw
    s2, t2 = _fold_bn(st2, m2, params["g2"], params["be2"])

    # --- stage 3: conv3 (1x1) (BN2+ReLU on read) + BN3 partial stats ---------
    z3, st3 = _act_matmul_stats(z2.reshape(m2, cm), s2, t2, w3,
                                jnp.float32, row_block)
    s3, t3 = _fold_bn(st3, m2, params["g3"], params["be3"])

    # --- shortcut + fused final add / relu -----------------------------------
    proj = (channels != channels_current) or (stride != 1)
    if proj:
        wsc = params["wsc"].astype(jnp.bfloat16)
        xs_rows = x_rows if stride == 1 else xph[:, 0, 0].reshape(m2, cin)
        zsc, stsc = _matmul_stats(xs_rows, wsc, jnp.float32, row_block)
        ssc, tsc = _fold_bn(stsc, m2, params["gsc"], params["besc"])
        out = _final_proj(z3, s3, t3, zsc, ssc, tsc, row_block)
    else:
        out = _final_identity(z3, s3, t3, x.reshape(m2, cout), row_block)

    out = out.reshape(n, ho, wo, cout)
    return jnp.transpose(out, (0, 3, 1, 2))                      # back to NCHW


# ----------------------------- parameters -------------------------------------
def init_block_params(key, channels_current, channels, compression, stride):
    cm = channels // compression
    ks = iter(jax.random.split(key, 24))

    def wgt(shape, fan_in):
        return jax.random.normal(next(ks), shape, jnp.float32) / jnp.sqrt(float(fan_in))

    def bn_params(c):
        g = 1.0 + 0.1 * jax.random.normal(next(ks), (1, c), jnp.float32)
        b = 0.1 * jax.random.normal(next(ks), (1, c), jnp.float32)
        return g, b

    # conv biases (b*) are used ONLY by the reference: a bias before BatchNorm
    # is cancelled exactly by the mean subtraction, so the kernel path drops it.
    p = {}
    p["w1"], p["b1"] = wgt((channels_current, cm), channels_current), wgt((1, cm), cm)
    p["g1"], p["be1"] = bn_params(cm)
    p["w2"], p["b2"] = wgt((3, 3, cm, cm), 9 * cm), wgt((1, cm), cm)
    p["g2"], p["be2"] = bn_params(cm)
    p["w3"], p["b3"] = wgt((cm, channels), cm), wgt((1, channels), channels)
    p["g3"], p["be3"] = bn_params(channels)
    if channels != channels_current or stride != 1:
        p["wsc"] = wgt((channels_current, channels), channels_current)
        p["bsc"] = wgt((1, channels), channels)
        p["gsc"], p["besc"] = bn_params(channels)
    return p


# ----------------------------- pure-JAX reference ------------------------------
def block_forward_ref(x_nchw, params, *, stride, channels_current, channels):
    x = jnp.transpose(x_nchw, (0, 2, 3, 1)).astype(jnp.float32)

    def conv(x, w, b, s, pad):
        y = lax.conv_general_dilated(x, w, (s, s), [(pad, pad), (pad, pad)],
                                     dimension_numbers=("NHWC", "HWIO", "NHWC"))
        return y + b.reshape(1, 1, 1, -1)

    def bn(y, g, be):
        m = jnp.mean(y, axis=(0, 1, 2), keepdims=True)
        v = jnp.mean(jnp.square(y - m), axis=(0, 1, 2), keepdims=True)
        return (y - m) * lax.rsqrt(v + EPS) * g.reshape(1, 1, 1, -1) + be.reshape(1, 1, 1, -1)

    cm = params["w1"].shape[1]
    y = jnp.maximum(bn(conv(x, params["w1"].reshape(1, 1, -1, cm), params["b1"], 1, 0),
                       params["g1"], params["be1"]), 0.0)
    y = jnp.maximum(bn(conv(y, params["w2"], params["b2"], stride, 1),
                       params["g2"], params["be2"]), 0.0)
    y = bn(conv(y, params["w3"].reshape(1, 1, cm, channels), params["b3"], 1, 0),
           params["g3"], params["be3"])
    if channels != channels_current or stride != 1:
        sc = bn(conv(x, params["wsc"].reshape(1, 1, channels_current, channels),
                     params["bsc"], stride, 0), params["gsc"], params["besc"])
    else:
        sc = x
    return jnp.transpose(jnp.maximum(y + sc, 0.0), (0, 3, 1, 2))


# ----------------------------- main --------------------------------------------
if __name__ == "__main__":
    key = jax.random.PRNGKey(0)
    kx, kp1, kp2 = jax.random.split(key, 3)

    # Case 1: projection shortcut (channels change, stride=2)
    cc, c, comp, s = 16, 32, 4, 2
    x = jax.random.normal(kx, (2, cc, 8, 8), jnp.float32)          # NCHW like torch
    p1 = init_block_params(kp1, cc, c, comp, s)
    fwd1 = jax.jit(functools.partial(block_forward, stride=s, channels_current=cc,
                                     channels=c, row_block=64))
    out1 = jax.block_until_ready(fwd1(x, p1))
    ref1 = block_forward_ref(x, p1, stride=s, channels_current=cc, channels=c)
    assert out1.shape == (2, c, 4, 4), out1.shape
    assert jnp.allclose(out1, ref1, atol=5e-2, rtol=5e-2), \
        float(jnp.max(jnp.abs(out1 - ref1)))

    # Case 2: identity shortcut (channels equal, stride=1)
    cc2, c2, comp2, s2 = 16, 16, 4, 1
    p2 = init_block_params(kp2, cc2, c2, comp2, s2)
    fwd2 = jax.jit(functools.partial(block_forward, stride=s2, channels_current=cc2,
                                     channels=c2, row_block=64))
    out2 = jax.block_until_ready(fwd2(x, p2))
    ref2 = block_forward_ref(x, p2, stride=s2, channels_current=cc2, channels=c2)
    assert out2.shape == (2, c2, 8, 8), out2.shape
    assert jnp.allclose(out2, ref2, atol=5e-2, rtol=5e-2), \
        float(jnp.max(jnp.abs(out2 - ref2)))

    print("KERNEL_OK")
</pallas_src>

<mosaic_0001>
module attributes {stable_mosaic.version = 11 : i64} {
  func.func @_mm_stats_kernel(%arg0: i32, %arg1: memref<64x16xf32, #tpu.memory_space<vmem>>, %arg2: memref<16x8xbf16, #tpu.memory_space<vmem>>, %arg3: memref<64x8xbf16, #tpu.memory_space<vmem>>, %arg4: memref<1x2x8xf32, #tpu.memory_space<vmem>>) attributes {dimension_semantics = [#tpu.dimension_semantics<parallel>], iteration_bounds = array<i64: 2>, scalar_prefetch = 0 : i64, scratch_operands = 0 : i64, tpu.core_type = #tpu.core_type<tc>, window_params = [{transform_indices = @transform_0, window_bounds = array<i64: 64, 16>}, {pipeline_mode = #tpu.pipeline_mode<synchronous>, transform_indices = @transform_1, window_bounds = array<i64: 16, 8>}, {transform_indices = @transform_2, window_bounds = array<i64: 64, 8>}, {transform_indices = @transform_3, window_bounds = array<i64: 1, 2, 8>}]} {
    %c0 = arith.constant 0 : index
    %c0_0 = arith.constant 0 : index
    %0 = vector.load %arg1[%c0, %c0_0] : memref<64x16xf32, #tpu.memory_space<vmem>>, vector<64x16xf32>
    %1 = arith.truncf %0 : vector<64x16xf32> to vector<64x16xbf16>
    %c0_1 = arith.constant 0 : index
    %c0_2 = arith.constant 0 : index
    %2 = vector.load %arg2[%c0_1, %c0_2] : memref<16x8xbf16, #tpu.memory_space<vmem>>, vector<16x8xbf16>
    %cst = arith.constant dense<0.000000e+00> : vector<64x8xf32>
    %3 = tpu.matmul %1, %2, %cst {dimension_numbers = #tpu.dot_dimension_numbers<[1], [0], [0], [1], [0, 0, 1, 1], [], []>} : vector<64x16xbf16>, vector<16x8xbf16>, vector<64x8xf32> -> vector<64x8xf32>
    %4 = arith.truncf %3 : vector<64x8xf32> to vector<64x8xbf16>
    %c0_3 = arith.constant 0 : index
    %c0_4 = arith.constant 0 : index
    %5 = vector.load %arg3[%c0_3, %c0_4] : memref<64x8xbf16, #tpu.memory_space<vmem>>, vector<64x8xbf16>
    tpu.vector_store %arg3[%c0_3, %c0_4], %4 {strides = array<i32>} : memref<64x8xbf16, #tpu.memory_space<vmem>>, vector<64x8xbf16>,
    %cst_5 = arith.constant dense<0.000000e+00> : vector<8xf32>
    %6 = vector.multi_reduction <add>, %3, %cst_5 [0] : vector<64x8xf32> to vector<8xf32>
    %7 = vector.shape_cast %6 : vector<8xf32> to vector<1x8xf32>
    %c0_6 = arith.constant 0 : index
    %c0_7 = arith.constant 0 : index
    %c0_8 = arith.constant 0 : index
    %8 = vector.load %arg4[%c0_6, %c0_7, %c0_8] : memref<1x2x8xf32, #tpu.memory_space<vmem>>, vector<1x1x8xf32>
    %9 = vector.shape_cast %8 : vector<1x1x8xf32> to vector<1x8xf32>
    %10 = vector.shape_cast %7 : vector<1x8xf32> to vector<1x1x8xf32>
    tpu.vector_store %arg4[%c0_6, %c0_7, %c0_8], %10 {strides = array<i32>} : memref<1x2x8xf32, #tpu.memory_space<vmem>>, vector<1x1x8xf32>,
    %11 = arith.mulf %3, %3 : vector<64x8xf32>
    %cst_9 = arith.constant dense<0.000000e+00> : vector<8xf32>
    %12 = vector.multi_reduction <add>, %11, %cst_9 [0] : vector<64x8xf32> to vector<8xf32>
    %13 = vector.shape_cast %12 : vector<8xf32> to vector<1x8xf32>
    %c0_10 = arith.constant 0 : index
    %c1 = arith.constant 1 : index
    %c0_11 = arith.constant 0 : index
    %14 = vector.load %arg4[%c0_10, %c1, %c0_11] : memref<1x2x8xf32, #tpu.memory_space<vmem>>, vector<1x1x8xf32>
    %15 = vector.shape_cast %14 : vector<1x1x8xf32> to vector<1x8xf32>
    %16 = vector.shape_cast %13 : vector<1x8xf32> to vector<1x1x8xf32>
    tpu.vector_store %arg4[%c0_10, %c1, %c0_11], %16 {strides = array<i32>} : memref<1x2x8xf32, #tpu.memory_space<vmem>>, vector<1x1x8xf32>,
    return
  }
  func.func @transform_0(%arg0: i32) -> (i32, i32) {
    %c0_i32 = arith.constant 0 : i32
    %c0_i32_0 = arith.constant 0 : i32
    return %arg0, %c0_i32 : i32, i32
  }
  func.func @transform_1(%arg0: i32) -> (i32, i32) {
    %c0_i32 = arith.constant 0 : i32
    %c0_i32_0 = arith.constant 0 : i32
    %c0_i32_1 = arith.constant 0 : i32
    return %c0_i32, %c0_i32_0 : i32, i32
  }
  func.func @transform_2(%arg0: i32) -> (i32, i32) {
    %c0_i32 = arith.constant 0 : i32
    %c0_i32_0 = arith.constant 0 : i32
    return %arg0, %c0_i32 : i32, i32
  }
  func.func @transform_3(%arg0: i32) -> (i32, i32, i32) {
    %c0_i32 = arith.constant 0 : i32
    %c0_i32_0 = arith.constant 0 : i32
    %c0_i32_1 = arith.constant 0 : i32
    return %arg0, %c0_i32, %c0_i32_0 : i32, i32, i32
  }
}

module attributes {stable_mosaic.version = 11 : i64} {
  func.func @_conv3x3_kernel(%arg0: i32, %arg1: memref<1x4x16x8xbf16, #tpu.memory_space<vmem>>, %arg2: memref<1x8xf32, #tpu.memory_space<vmem>>, %arg3: memref<1x8xf32, #tpu.memory_space<vmem>>, %arg4: memref<9x8x8xbf16, #tpu.memory_space<vmem>>, %arg5: memref<16x1xbf16, #tpu.memory_space<vmem>>, %arg6: memref<16x1xbf16, #tpu.memory_space<vmem>>, %arg7: memref<1x16x8xbf16, #tpu.memory_space<vmem>>, %arg8: memref<1x2x8xf32, #tpu.memory_space<vmem>>, %arg9: memref<4x26x8xbf16, #tpu.memory_space<vmem>>) attributes {dimension_semantics = [#tpu.dimension_semantics<parallel>], iteration_bounds = array<i64: 2>, scalar_prefetch = 0 : i64, scratch_operands = 1 : i64, tpu.core_type = #tpu.core_type<tc>, window_params = [{transform_indices = @transform_0, window_bounds = array<i64: 1, 4, 16, 8>}, {pipeline_mode = #tpu.pipeline_mode<synchronous>, transform_indices = @transform_1, window_bounds = array<i64: 1, 8>}, {pipeline_mode = #tpu.pipeline_mode<synchronous>, transform_indices = @transform_2, window_bounds = array<i64: 1, 8>}, {pipeline_mode = #tpu.pipeline_mode<synchronous>, transform_indices = @transform_3, window_bounds = array<i64: 9, 8, 8>}, {pipeline_mode = #tpu.pipeline_mode<synchronous>, transform_indices = @transform_4, window_bounds = array<i64: 16, 1>}, {pipeline_mode = #tpu.pipeline_mode<synchronous>, transform_indices = @transform_5, window_bounds = array<i64: 16, 1>}, {transform_indices = @transform_6, window_bounds = array<i64: 1, 16, 8>}, {transform_indices = @transform_7, window_bounds = array<i64: 1, 2, 8>}]} {
    %c0 = arith.constant 0 : index
    %c0_0 = arith.constant 0 : index
    %0 = vector.load %arg2[%c0, %c0_0] : memref<1x8xf32, #tpu.memory_space<vmem>>, vector<1x8xf32>
    %c0_1 = arith.constant 0 : index
    %c0_2 = arith.constant 0 : index
    %1 = vector.load %arg3[%c0_1, %c0_2] : memref<1x8xf32, #tpu.memory_space<vmem>>, vector<1x8xf32>
    %cst = arith.constant 0.000000e+00 : bf16
    %2 = vector.broadcast %cst : bf16 to vector<4x26x8xbf16>
    %c0_3 = arith.constant 0 : index
    %c0_4 = arith.constant 0 : index
    %c0_5 = arith.constant 0 : index
    %3 = vector.load %arg9[%c0_3, %c0_4, %c0_5] : memref<4x26x8xbf16, #tpu.memory_space<vmem>>, vector<4x26x8xbf16>
    tpu.vector_store %arg9[%c0_3, %c0_4, %c0_5], %2 {strides = array<i32>} : memref<4x26x8xbf16, #tpu.memory_space<vmem>>, vector<4x26x8xbf16>,
    %c0_6 = arith.constant 0 : index
    %c0_7 = arith.constant 0 : index
    %c0_8 = arith.constant 0 : index
    %c0_9 = arith.constant 0 : index
    %4 = vector.load %arg1[%c0_6, %c0_7, %c0_8, %c0_9] : memref<1x4x16x8xbf16, #tpu.memory_space<vmem>>, vector<1x1x16x8xbf16>
    %5 = vector.shape_cast %4 : vector<1x1x16x8xbf16> to vector<16x8xbf16>
    %6 = arith.extf %5 : vector<16x8xbf16> to vector<16x8xf32>
    %7 = vector.broadcast %0 : vector<1x8xf32> to vector<16x8xf32>
    %8 = arith.mulf %6, %7 : vector<16x8xf32>
    %9 = vector.broadcast %1 : vector<1x8xf32> to vector<16x8xf32>
    %10 = arith.addf %8, %9 : vector<16x8xf32>
    %cst_10 = arith.constant 0.000000e+00 : f32
    %11 = vector.broadcast %cst_10 : f32 to vector<16x8xf32>
    %12 = arith.maximumf %10, %11 : vector<16x8xf32>
    %13 = arith.truncf %12 : vector<16x8xf32> to vector<16x8xbf16>
    %c0_11 = arith.constant 0 : index
    %c5 = arith.constant 5 : index
    %c0_12 = arith.constant 0 : index
    %14 = vector.load %arg9[%c0_11, %c5, %c0_12] : memref<4x26x8xbf16, #tpu.memory_space<vmem>>, vector<1x16x8xbf16>
    %15 = vector.shape_cast %14 : vector<1x16x8xbf16> to vector<16x8xbf16>
    %16 = vector.shape_cast %13 : vector<16x8xbf16> to vector<1x16x8xbf16>
    tpu.vector_store %arg9[%c0_11, %c5, %c0_12], %16 {strides = array<i32>} : memref<4x26x8xbf16, #tpu.memory_space<vmem>>, vector<1x16x8xbf16>,
    %c0_13 = arith.constant 0 : index
    %c1 = arith.constant 1 : index
    %c0_14 = arith.constant 0 : index
    %c0_15 = arith.constant 0 : index
    %17 = vector.load %arg1[%c0_13, %c1, %c0_14, %c0_15] : memref<1x4x16x8xbf16, #tpu.memory_space<vmem>>, vector<1x1x16x8xbf16>
    %18 = vector.shape_cast %17 : vector<1x1x16x8xbf16> to vector<16x8xbf16>
    %19 = arith.extf %18 : vector<16x8xbf16> to vector<16x8xf32>
    %20 = vector.broadcast %0 : vector<1x8xf32> to vector<16x8xf32>
    %21 = arith.mulf %19, %20 : vector<16x8xf32>
    %22 = vector.broadcast %1 : vector<1x8xf32> to vector<16x8xf32>
    %23 = arith.addf %21, %22 : vector<16x8xf32>
    %cst_16 = arith.constant 0.000000e+00 : f32
    %24 = vector.broadcast %cst_16 : f32 to vector<16x8xf32>
    %25 = arith.maximumf %23, %24 : vector<16x8xf32>
    %26 = arith.truncf %25 : vector<16x8xf32> to vector<16x8xbf16>
    %c1_17 = arith.constant 1 : index
    %c5_18 = arith.constant 5 : index
    %c0_19 = arith.constant 0 : index
    %27 = vector.load %arg9[%c1_17, %c5_18, %c0_19] : memref<4x26x8xbf16, #tpu.memory_space<vmem>>, vector<1x16x8xbf16>
    %28 = vector.shape_cast %27 : vector<1x16x8xbf16> to vector<16x8xbf16>
    %29 = vector.shape_cast %26 : vector<16x8xbf16> to vector<1x16x8xbf16>
    tpu.vector_store %arg9[%c1_17, %c5_18, %c0_19], %29 {strides = array<i32>} : memref<4x26x8xbf16, #tpu.memory_space<vmem>>, vector<1x16x8xbf16>,
    %c0_20 = arith.constant 0 : index
    %c2 = arith.constant 2 : index
    %c0_21 = arith.constant 0 : index
    %c0_22 = arith.constant 0 : index
    %30 = vector.load %arg1[%c0_20, %c2, %c0_21, %c0_22] : memref<1x4x16x8xbf16, #tpu.memory_space<vmem>>, vector<1x1x16x8xbf16>
    %31 = vector.shape_cast %30 : vector<1x1x16x8xbf16> to vector<16x8xbf16>
    %32 = arith.extf %31 : vector<16x8xbf16> to vector<16x8xf32>
    %33 = vector.broadcast %0 : vector<1x8xf32> to vector<16x8xf32>
    %34 = arith.mulf %32, %33 : vector<16x8xf32>
    %35 = vector.broadcast %1 : vector<1x8xf32> to vector<16x8xf32>
    %36 = arith.addf %34, %35 : vector<16x8xf32>
    %cst_23 = arith.constant 0.000000e+00 : f32
    %37 = vector.broadcast %cst_23 : f32 to vector<16x8xf32>
    %38 = arith.maximumf %36, %37 : vector<16x8xf32>
    %39 = arith.truncf %38 : vector<16x8xf32> to vector<16x8xbf16>
    %c2_24 = arith.constant 2 : index
    %c5_25 = arith.constant 5 : index
    %c0_26 = arith.constant 0 : index
    %40 = vector.load %arg9[%c2_24, %c5_25, %c0_26] : memref<4x26x8xbf16, #tpu.memory_space<vmem>>, vector<1x16x8xbf16>
    %41 = vector.shape_cast %40 : vector<1x16x8xbf16> to vector<16x8xbf16>
    %42 = vector.shape_cast %39 : vector<16x8xbf16> to vector<1x16x8xbf16>
    tpu.vector_store %arg9[%c2_24, %c5_25, %c0_26], %42 {strides = array<i32>} : memref<4x26x8xbf16, #tpu.memory_space<vmem>>, vector<1x16x8xbf16>,
    %c0_27 = arith.constant 0 : index
    %c3 = arith.constant 3 : index
    %c0_28 = arith.constant 0 : index
    %c0_29 = arith.constant 0 : index
    %43 = vector.load %arg1[%c0_27, %c3, %c0_28, %c0_29] : memref<1x4x16x8xbf16, #tpu.memory_space<vmem>>, vector<1x1x16x8xbf16>
    %44 = vector.shape_cast %43 : vector<1x1x16x8xbf16> to vector<16x8xbf16>
    %45 = arith.extf %44 : vector<16x8xbf16> to vector<16x8xf32>
    %46 = vector.broadcast %0 : vector<1x8xf32> to vector<16x8xf32>
    %47 = arith.mulf %45, %46 : vector<16x8xf32>
    %48 = vector.broadcast %1 : vector<1x8xf32> to vector<16x8xf32>
    %49 = arith.addf %47, %48 : vector<16x8xf32>
    %cst_30 = arith.constant 0.000000e+00 : f32
    %50 = vector.broadcast %cst_30 : f32 to vector<16x8xf32>
    %51 = arith.maximumf %49, %50 : vector<16x8xf32>
    %52 = arith.truncf %51 : vector<16x8xf32> to vector<16x8xbf16>
    %c3_31 = arith.constant 3 : index
    %c5_32 = arith.constant 5 : index
    %c0_33 = arith.constant 0 : index
    %53 = vector.load %arg9[%c3_31, %c5_32, %c0_33] : memref<4x26x8xbf16, #tpu.memory_space<vmem>>, vector<1x16x8xbf16>
    %54 = vector.shape_cast %53 : vector<1x16x8xbf16> to vector<16x8xbf16>
    %55 = vector.shape_cast %52 : vector<16x8xbf16> to vector<1x16x8xbf16>
    tpu.vector_store %arg9[%c3_31, %c5_32, %c0_33], %55 {strides = array<i32>} : memref<4x26x8xbf16, #tpu.memory_space<vmem>>, vector<1x16x8xbf16>,
    %cst_34 = arith.constant 0.000000e+00 : f32
    %56 = vector.broadcast %cst_34 : f32 to vector<16x8xf32>
    %c3_35 = arith.constant 3 : index
    %c0_36 = arith.constant 0 : index
    %c0_37 = arith.constant 0 : index
    %57 = vector.load %arg9[%c3_35, %c0_36, %c0_37] : memref<4x26x8xbf16, #tpu.memory_space<vmem>>, vector<1x16x8xbf16>
    %58 = vector.shape_cast %57 : vector<1x16x8xbf16> to vector<16x8xbf16>
    %c0_38 = arith.constant 0 : index
    %c0_39 = arith.constant 0 : index
    %59 = vector.load %arg5[%c0_38, %c0_39] : memref<16x1xbf16, #tpu.memory_space<vmem>>, vector<16x1xbf16>
    %60 = vector.broadcast %59 : vector<16x1xbf16> to vector<16x8xbf16>
    %61 = arith.mulf %58, %60 : vector<16x8xbf16>
    %c0_40 = arith.constant 0 : index
    %c0_41 = arith.constant 0 : index
    %c0_42 = arith.constant 0 : index
    %62 = vector.load %arg4[%c0_40, %c0_41, %c0_42] : memref<9x8x8xbf16, #tpu.memory_space<vmem>>, vector<1x8x8xbf16>
    %63 = vector.shape_cast %62 : vector<1x8x8xbf16> to vector<8x8xbf16>
    %cst_43 = arith.constant dense<0.000000e+00> : vector<16x8xf32>
    %64 = tpu.matmul %61, %63, %cst_43 {dimension_numbers = #tpu.dot_dimension_numbers<[1], [0], [0], [1], [0, 0, 1, 1], [], []>} : vector<16x8xbf16>, vector<8x8xbf16>, vector<16x8xf32> -> vector<16x8xf32>
    %65 = arith.addf %56, %64 : vector<16x8xf32>
    %c2_44 = arith.constant 2 : index
    %c1_45 = arith.constant 1 : index
    %c0_46 = arith.constant 0 : index
    %66 = vector.load %arg9[%c2_44, %c1_45, %c0_46] : memref<4x26x8xbf16, #tpu.memory_space<vmem>>, vector<1x16x8xbf16>
    %67 = vector.shape_cast %66 : vector<1x16x8xbf16> to vector<16x8xbf16>
    %c1_47 = arith.constant 1 : index
    %c0_48 = arith.constant 0 : index
    %c0_49 = arith.constant 0 : index
    %68 = vector.load %arg4[%c1_47, %c0_48, %c0_49] : memref<9x8x8xbf16, #tpu.memory_space<vmem>>, vector<1x8x8xbf16>
    %69 = vector.shape_cast %68 : vector<1x8x8xbf16> to vector<8x8xbf16>
    %cst_50 = arith.constant dense<0.000000e+00> : vector<16x8xf32>
    %70 = tpu.matmul %67, %69, %cst_50 {dimension_numbers = #tpu.dot_dimension_numbers<[1], [0], [0], [1], [0, 0, 1, 1], [], []>} : vector<16x8xbf16>, vector<8x8xbf16>, vector<16x8xf32> -> vector<16x8xf32>
    %71 = arith.addf %65, %70 : vector<16x8xf32>
    %c3_51 = arith.constant 3 : index
    %c1_52 = arith.constant 1 : index
    %c0_53 = arith.constant 0 : index
    %72 = vector.load %arg9[%c3_51, %c1_52, %c0_53] : memref<4x26x8xbf16, #tpu.memory_space<vmem>>, vector<1x16x8xbf16>
    %73 = vector.shape_cast %72 : vector<1x16x8xbf16> to vector<16x8xbf16>
    %c2_54 = arith.constant 2 : index
    %c0_55 = arith.constant 0 : index
    %c0_56 = arith.constant 0 : index
    %74 = vector.load %arg4[%c2_54, %c0_55, %c0_56] : memref<9x8x8xbf16, #tpu.memory_space<vmem>>, vector<1x8x8xbf16>
    %75 = vector.shape_cast %74 : vector<1x8x8xbf16> to vector<8x8xbf16>
    %cst_57 = arith.constant dense<0.000000e+00> : vector<16x8xf32>
    %76 = tpu.matmul %73, %75, %cst_57 {dimension_numbers = #tpu.dot_dimension_numbers<[1], [0], [0], [1], [0, 0, 1, 1], [], []>} : vector<16x8xbf16>, vector<8x8xbf16>, vector<16x8xf32> -> vector<16x8xf32>
    %77 = arith.addf %71, %76 : vector<16x8xf32>
    %c1_58 = arith.constant 1 : index
    %c4 = arith.constant 4 : index
    %c0_59 = arith.constant 0 : index
    %78 = vector.load %arg9[%c1_58, %c4, %c0_59] : memref<4x26x8xbf16, #tpu.memory_space<vmem>>, vector<1x16x8xbf16>
    %79 = vector.shape_cast %78 : vector<1x16x8xbf16> to vector<16x8xbf16>
    %c0_60 = arith.constant 0 : index
    %c0_61 = arith.constant 0 : index
    %80 = vector.load %arg5[%c0_60, %c0_61] : memref<16x1xbf16, #tpu.memory_space<vmem>>, vector<16x1xbf16>
    %81 = vector.broadcast %80 : vector<16x1xbf16> to vector<16x8xbf16>
    %82 = arith.mulf %79, %81 : vector<16x8xbf16>
    %c3_62 = arith.constant 3 : index
    %c0_63 = arith.constant 0 : index
    %c0_64 = arith.constant 0 : index
    %83 = vector.load %arg4[%c3_62, %c0_63, %c0_64] : memref<9x8x8xbf16, #tpu.memory_space<vmem>>, vector<1x8x8xbf16>
    %84 = vector.shape_cast %83 : vector<1x8x8xbf16> to vector<8x8xbf16>
    %cst_65 = arith.constant dense<0.000000e+00> : vector<16x8xf32>
    %85 = tpu.matmul %82, %84, %cst_65 {dimension_numbers = #tpu.dot_dimension_numbers<[1], [0], [0], [1], [0, 0, 1, 1], [], []>} : vector<16x8xbf16>, vector<8x8xbf16>, vector<16x8xf32> -> vector<16x8xf32>
    %86 = arith.addf %77, %85 : vector<16x8xf32>
    %c0_66 = arith.constant 0 : index
    %c5_67 = arith.constant 5 : index
    %c0_68 = arith.constant 0 : index
    %87 = vector.load %arg9[%c0_66, %c5_67, %c0_68] : memref<4x26x8xbf16, #tpu.memory_space<vmem>>, vector<1x16x8xbf16>
    %88 = vector.shape_cast %87 : vector<1x16x8xbf16> to vector<16x8xbf16>
    %c4_69 = arith.constant 4 : index
    %c0_70 = arith.constant 0 : index
    %c0_71 = arith.constant 0 : index
    %89 = vector.load %arg4[%c4_69, %c0_70, %c0_71] : memref<9x8x8xbf16, #tpu.memory_space<vmem>>, vector<1x8x8xbf16>
    %90 = vector.shape_cast %89 : vector<1x8x8xbf16> to vector<8x8xbf16>
    %cst_72 = arith.constant dense<0.000000e+00> : vector<16x8xf32>
    %91 = tpu.matmul %88, %90, %cst_72 {dimension_numbers = #tpu.dot_dimension_numbers<[1], [0], [0], [1], [0, 0, 1, 1], [], []>} : vector<16x8xbf16>, vector<8x8xbf16>, vector<16x8xf32> -> vector<16x8xf32>
    %92 = arith.addf %86, %91 : vector<16x8xf32>
    %c1_73 = arith.constant 1 : index
    %c5_74 = arith.constant 5 : index
    %c0_75 = arith.constant 0 : index
    %93 = vector.load %arg9[%c1_73, %c5_74, %c0_75] : memref<4x26x8xbf16, #tpu.memory_space<vmem>>, vector<1x16x8xbf16>
    %94 = vector.shape_cast %93 : vector<1x16x8xbf16> to vector<16x8xbf16>
    %c5_76 = arith.constant 5 : index
    %c0_77 = arith.constant 0 : index
    %c0_78 = arith.constant 0 : index
    %95 = vector.load %arg4[%c5_76, %c0_77, %c0_78] : memref<9x8x8xbf16, #tpu.memory_space<vmem>>, vector<1x8x8xbf16>
    %96 = vector.shape_cast %95 : vector<1x8x8xbf16> to vector<8x8xbf16>
    %cst_79 = arith.constant dense<0.000000e+00> : vector<16x8xf32>
    %97 = tpu.matmul %94, %96, %cst_79 {dimension_numbers = #tpu.dot_dimension_numbers<[1], [0], [0], [1], [0, 0, 1, 1], [], []>} : vector<16x8xbf16>, vector<8x8xbf16>, vector<16x8xf32> -> vector<16x8xf32>
    %98 = arith.addf %92, %97 : vector<16x8xf32>
    %c3_80 = arith.constant 3 : index
    %c4_81 = arith.constant 4 : index
    %c0_82 = arith.constant 0 : index
    %99 = vector.load %arg9[%c3_80, %c4_81, %c0_82] : memref<4x26x8xbf16, #tpu.memory_space<vmem>>, vector<1x16x8xbf16>
    %100 = vector.shape_cast %99 : vector<1x16x8xbf16> to vector<16x8xbf16>
    %c0_83 = arith.constant 0 : index
    %c0_84 = arith.constant 0 : index
    %101 = vector.load %arg5[%c0_83, %c0_84] : memref<16x1xbf16, #tpu.memory_space<vmem>>, vector<16x1xbf16>
    %102 = vector.broadcast %101 : vector<16x1xbf16> to vector<16x8xbf16>
    %103 = arith.mulf %100, %102 : vector<16x8xbf16>
    %c6 = arith.constant 6 : index
    %c0_85 = arith.constant 0 : index
    %c0_86 = arith.constant 0 : index
    %104 = vector.load %arg4[%c6, %c0_85, %c0_86] : memref<9x8x8xbf16, #tpu.memory_space<vmem>>, vector<1x8x8xbf16>
    %105 = vector.shape_cast %104 : vector<1x8x8xbf16> to vector<8x8xbf16>
    %cst_87 = arith.constant dense<0.000000e+00> : vector<16x8xf32>
    %106 = tpu.matmul %103, %105, %cst_87 {dimension_numbers = #tpu.dot_dimension_numbers<[1], [0], [0], [1], [0, 0, 1, 1], [], []>} : vector<16x8xbf16>, vector<8x8xbf16>, vector<16x8xf32> -> vector<16x8xf32>
    %107 = arith.addf %98, %106 : vector<16x8xf32>
    %c2_88 = arith.constant 2 : index
    %c5_89 = arith.constant 5 : index
    %c0_90 = arith.constant 0 : index
    %108 = vector.load %arg9[%c2_88, %c5_89, %c0_90] : memref<4x26x8xbf16, #tpu.memory_space<vmem>>, vector<1x16x8xbf16>
    %109 = vector.shape_cast %108 : vector<1x16x8xbf16> to vector<16x8xbf16>
    %c7 = arith.constant 7 : index
    %c0_91 = arith.constant 0 : index
    %c0_92 = arith.constant 0 : index
    %110 = vector.load %arg4[%c7, %c0_91, %c0_92] : memref<9x8x8xbf16, #tpu.memory_space<vmem>>, vector<1x8x8xbf16>
    %111 = vector.shape_cast %110 : vector<1x8x8xbf16> to vector<8x8xbf16>
    %cst_93 = arith.constant dense<0.000000e+00> : vector<16x8xf32>
    %112 = tpu.matmul %109, %111, %cst_93 {dimension_numbers = #tpu.dot_dimension_numbers<[1], [0], [0], [1], [0, 0, 1, 1], [], []>} : vector<16x8xbf16>, vector<8x8xbf16>, vector<16x8xf32> -> vector<16x8xf32>
    %113 = arith.addf %107, %112 : vector<16x8xf32>
    %c3_94 = arith.constant 3 : index
    %c5_95 = arith.constant 5 : index
    %c0_96 = arith.constant 0 : index
    %114 = vector.load %arg9[%c3_94, %c5_95, %c0_96] : memref<4x26x8xbf16, #tpu.memory_space<vmem>>, vector<1x16x8xbf16>
    %115 = vector.shape_cast %114 : vector<1x16x8xbf16> to vector<16x8xbf16>
    %c8 = arith.constant 8 : index
    %c0_97 = arith.constant 0 : index
    %c0_98 = arith.constant 0 : index
    %116 = vector.load %arg4[%c8, %c0_97, %c0_98] : memref<9x8x8xbf16, #tpu.memory_space<vmem>>, vector<1x8x8xbf16>
    %117 = vector.shape_cast %116 : vector<1x8x8xbf16> to vector<8x8xbf16>
    %cst_99 = arith.constant dense<0.000000e+00> : vector<16x8xf32>
    %118 = tpu.matmul %115, %117, %cst_99 {dimension_numbers = #tpu.dot_dimension_numbers<[1], [0], [0], [1], [0, 0, 1, 1], [], []>} : vector<16x8xbf16>, vector<8x8xbf16>, vector<16x8xf32> -> vector<16x8xf32>
    %119 = arith.addf %113, %118 : vector<16x8xf32>
    %120 = arith.truncf %119 : vector<16x8xf32> to vector<16x8xbf16>
    %c0_100 = arith.constant 0 : index
    %c0_101 = arith.constant 0 : index
    %c0_102 = arith.constant 0 : index
    %121 = vector.load %arg7[%c0_100, %c0_101, %c0_102] : memref<1x16x8xbf16, #tpu.memory_space<vmem>>, vector<1x16x8xbf16>
    %122 = vector.shape_cast %121 : vector<1x16x8xbf16> to vector<16x8xbf16>
    %123 = vector.shape_cast %120 : vector<16x8xbf16> to vector<1x16x8xbf16>
    tpu.vector_store %arg7[%c0_100, %c0_101, %c0_102], %123 {strides = array<i32>} : memref<1x16x8xbf16, #tpu.memory_space<vmem>>, vector<1x16x8xbf16>,
    %cst_103 = arith.constant dense<0.000000e+00> : vector<8xf32>
    %124 = vector.multi_reduction <add>, %119, %cst_103 [0] : vector<16x8xf32> to vector<8xf32>
    %125 = vector.shape_cast %124 : vector<8xf32> to vector<1x8xf32>
    %c0_104 = arith.constant 0 : index
    %c0_105 = arith.constant 0 : index
    %c0_106 = arith.constant 0 : index
    %126 = vector.load %arg8[%c0_104, %c0_105, %c0_106] : memref<1x2x8xf32, #tpu.memory_space<vmem>>, vector<1x1x8xf32>
    %127 = vector.shape_cast %126 : vector<1x1x8xf32> to vector<1x8xf32>
    %128 = vector.shape_cast %125 : vector<1x8xf32> to vector<1x1x8xf32>
    tpu.vector_store %arg8[%c0_104, %c0_105, %c0_106], %128 {strides = array<i32>} : memref<1x2x8xf32, #tpu.memory_space<vmem>>, vector<1x1x8xf32>,
    %129 = arith.mulf %119, %119 : vector<16x8xf32>
    %cst_107 = arith.constant dense<0.000000e+00> : vector<8xf32>
    %130 = vector.multi_reduction <add>, %129, %cst_107 [0] : vector<16x8xf32> to vector<8xf32>
    %131 = vector.shape_cast %130 : vector<8xf32> to vector<1x8xf32>
    %c0_108 = arith.constant 0 : index
    %c1_109 = arith.constant 1 : index
    %c0_110 = arith.constant 0 : index
    %132 = vector.load %arg8[%c0_108, %c1_109, %c0_110] : memref<1x2x8xf32, #tpu.memory_space<vmem>>, vector<1x1x8xf32>
    %133 = vector.shape_cast %132 : vector<1x1x8xf32> to vector<1x8xf32>
    %134 = vector.shape_cast %131 : vector<1x8xf32> to vector<1x1x8xf32>
    tpu.vector_store %arg8[%c0_108, %c1_109, %c0_110], %134 {strides = array<i32>} : memref<1x2x8xf32, #tpu.memory_space<vmem>>, vector<1x1x8xf32>,
    return
  }
  func.func @transform_0(%arg0: i32) -> (i32, i32, i32, i32) {
    %c0_i32 = arith.constant 0 : i32
    %c0_i32_0 = arith.constant 0 : i32
    %c0_i32_1 = arith.constant 0 : i32
    %c0_i32_2 = arith.constant 0 : i32
    return %arg0, %c0_i32, %c0_i32_0, %c0_i32_1 : i32, i32, i32, i32
  }
  func.func @transform_1(%arg0: i32) -> (i32, i32) {
    %c0_i32 = arith.constant 0 : i32
    %c0_i32_0 = arith.constant 0 : i32
    %c0_i32_1 = arith.constant 0 : i32
    return %c0_i32, %c0_i32_0 : i32, i32
  }
  func.func @transform_2(%arg0: i32) -> (i32, i32) {
    %c0_i32 = arith.constant 0 : i32
    %c0_i32_0 = arith.constant 0 : i32
    %c0_i32_1 = arith.constant 0 : i32
    return %c0_i32, %c0_i32_0 : i32, i32
  }
  func.func @transform_3(%arg0: i32) -> (i32, i32, i32) {
    %c0_i32 = arith.constant 0 : i32
    %c0_i32_0 = arith.constant 0 : i32
    %c0_i32_1 = arith.constant 0 : i32
    %c0_i32_2 = arith.constant 0 : i32
    return %c0_i32, %c0_i32_0, %c0_i32_1 : i32, i32, i32
  }
  func.func @transform_4(%arg0: i32) -> (i32, i32) {
    %c0_i32 = arith.constant 0 : i32
    %c0_i32_0 = arith.constant 0 : i32
    %c0_i32_1 = arith.constant 0 : i32
    return %c0_i32, %c0_i32_0 : i32, i32
  }
  func.func @transform_5(%arg0: i32) -> (i32, i32) {
    %c0_i32 = arith.constant 0 : i32
    %c0_i32_0 = arith.constant 0 : i32
    %c0_i32_1 = arith.constant 0 : i32
    return %c0_i32, %c0_i32_0 : i32, i32
  }
  func.func @transform_6(%arg0: i32) -> (i32, i32, i32) {
    %c0_i32 = arith.constant 0 : i32
    %c0_i32_0 = arith.constant 0 : i32
    %c0_i32_1 = arith.constant 0 : i32
    return %arg0, %c0_i32, %c0_i32_0 : i32, i32, i32
  }
  func.func @transform_7(%arg0: i32) -> (i32, i32, i32) {
    %c0_i32 = arith.constant 0 : i32
    %c0_i32_0 = arith.constant 0 : i32
    %c0_i32_1 = arith.constant 0 : i32
    return %arg0, %c0_i32, %c0_i32_0 : i32, i32, i32
  }
}

module attributes {stable_mosaic.version = 11 : i64} {
  func.func @_act_mm_stats_kernel(%arg0: i32, %arg1: memref<32x8xbf16, #tpu.memory_space<vmem>>, %arg2: memref<1x8xf32, #tpu.memory_space<vmem>>, %arg3: memref<1x8xf32, #tpu.memory_space<vmem>>, %arg4: memref<8x32xbf16, #tpu.memory_space<vmem>>, %arg5: memref<32x32xf32, #tpu.memory_space<vmem>>, %arg6: memref<1x2x32xf32, #tpu.memory_space<vmem>>) attributes {dimension_semantics = [#tpu.dimension_semantics<parallel>], iteration_bounds = array<i64: 1>, scalar_prefetch = 0 : i64, scratch_operands = 0 : i64, tpu.core_type = #tpu.core_type<tc>, window_params = [{transform_indices = @transform_0, window_bounds = array<i64: 32, 8>}, {pipeline_mode = #tpu.pipeline_mode<synchronous>, transform_indices = @transform_1, window_bounds = array<i64: 1, 8>}, {pipeline_mode = #tpu.pipeline_mode<synchronous>, transform_indices = @transform_2, window_bounds = array<i64: 1, 8>}, {pipeline_mode = #tpu.pipeline_mode<synchronous>, transform_indices = @transform_3, window_bounds = array<i64: 8, 32>}, {transform_indices = @transform_4, window_bounds = array<i64: 32, 32>}, {transform_indices = @transform_5, window_bounds = array<i64: 1, 2, 32>}]} {
    %c0 = arith.constant 0 : index
    %c0_0 = arith.constant 0 : index
    %0 = vector.load %arg1[%c0, %c0_0] : memref<32x8xbf16, #tpu.memory_space<vmem>>, vector<32x8xbf16>
    %1 = arith.extf %0 : vector<32x8xbf16> to vector<32x8xf32>
    %c0_1 = arith.constant 0 : index
    %c0_2 = arith.constant 0 : index
    %2 = vector.load %arg2[%c0_1, %c0_2] : memref<1x8xf32, #tpu.memory_space<vmem>>, vector<1x8xf32>
    %3 = vector.broadcast %2 : vector<1x8xf32> to vector<32x8xf32>
    %4 = arith.mulf %1, %3 : vector<32x8xf32>
    %c0_3 = arith.constant 0 : index
    %c0_4 = arith.constant 0 : index
    %5 = vector.load %arg3[%c0_3, %c0_4] : memref<1x8xf32, #tpu.memory_space<vmem>>, vector<1x8xf32>
    %6 = vector.broadcast %5 : vector<1x8xf32> to vector<32x8xf32>
    %7 = arith.addf %4, %6 : vector<32x8xf32>
    %cst = arith.constant 0.000000e+00 : f32
    %8 = vector.broadcast %cst : f32 to vector<32x8xf32>
    %9 = arith.maximumf %7, %8 : vector<32x8xf32>
    %10 = arith.truncf %9 : vector<32x8xf32> to vector<32x8xbf16>
    %c0_5 = arith.constant 0 : index
    %c0_6 = arith.constant 0 : index
    %11 = vector.load %arg4[%c0_5, %c0_6] : memref<8x32xbf16, #tpu.memory_space<vmem>>, vector<8x32xbf16>
    %cst_7 = arith.constant dense<0.000000e+00> : vector<32x32xf32>
    %12 = tpu.matmul %10, %11, %cst_7 {dimension_numbers = #tpu.dot_dimension_numbers<[1], [0], [0], [1], [0, 0, 1, 1], [], []>} : vector<32x8xbf16>, vector<8x32xbf16>, vector<32x32xf32> -> vector<32x32xf32>
    %c0_8 = arith.constant 0 : index
    %c0_9 = arith.constant 0 : index
    %13 = vector.load %arg5[%c0_8, %c0_9] : memref<32x32xf32, #tpu.memory_space<vmem>>, vector<32x32xf32>
    tpu.vector_store %arg5[%c0_8, %c0_9], %12 {strides = array<i32>} : memref<32x32xf32, #tpu.memory_space<vmem>>, vector<32x32xf32>,
    %cst_10 = arith.constant dense<0.000000e+00> : vector<32xf32>
    %14 = vector.multi_reduction <add>, %12, %cst_10 [0] : vector<32x32xf32> to vector<32xf32>
    %15 = vector.shape_cast %14 : vector<32xf32> to vector<1x32xf32>
    %c0_11 = arith.constant 0 : index
    %c0_12 = arith.constant 0 : index
    %c0_13 = arith.constant 0 : index
    %16 = vector.load %arg6[%c0_11, %c0_12, %c0_13] : memref<1x2x32xf32, #tpu.memory_space<vmem>>, vector<1x1x32xf32>
    %17 = vector.shape_cast %16 : vector<1x1x32xf32> to vector<1x32xf32>
    %18 = vector.shape_cast %15 : vector<1x32xf32> to vector<1x1x32xf32>
    tpu.vector_store %arg6[%c0_11, %c0_12, %c0_13], %18 {strides = array<i32>} : memref<1x2x32xf32, #tpu.memory_space<vmem>>, vector<1x1x32xf32>,
    %19 = arith.mulf %12, %12 : vector<32x32xf32>
    %cst_14 = arith.constant dense<0.000000e+00> : vector<32xf32>
    %20 = vector.multi_reduction <add>, %19, %cst_14 [0] : vector<32x32xf32> to vector<32xf32>
    %21 = vector.shape_cast %20 : vector<32xf32> to vector<1x32xf32>
    %c0_15 = arith.constant 0 : index
    %c1 = arith.constant 1 : index
    %c0_16 = arith.constant 0 : index
    %22 = vector.load %arg6[%c0_15, %c1, %c0_16] : memref<1x2x32xf32, #tpu.memory_space<vmem>>, vector<1x1x32xf32>
    %23 = vector.shape_cast %22 : vector<1x1x32xf32> to vector<1x32xf32>
    %24 = vector.shape_cast %21 : vector<1x32xf32> to vector<1x1x32xf32>
    tpu.vector_store %arg6[%c0_15, %c1, %c0_16], %24 {strides = array<i32>} : memref<1x2x32xf32, #tpu.memory_space<vmem>>, vector<1x1x32xf32>,
    return
  }
  func.func @transform_0(%arg0: i32) -> (i32, i32) {
    %c0_i32 = arith.constant 0 : i32
    %c0_i32_0 = arith.constant 0 : i32
    return %arg0, %c0_i32 : i32, i32
  }
  func.func @transform_1(%arg0: i32) -> (i32, i32) {
    %c0_i32 = arith.constant 0 : i32
    %c0_i32_0 = arith.constant 0 : i32
    %c0_i32_1 = arith.constant 0 : i32
    return %c0_i32, %c0_i32_0 : i32, i32
  }
  func.func @transform_2(%arg0: i32) -> (i32, i32) {
    %c0_i32 = arith.constant 0 : i32
    %c0_i32_0 = arith.constant 0 : i32
    %c0_i32_1 = arith.constant 0 : i32
    return %c0_i32, %c0_i32_0 : i32, i32
  }
  func.func @transform_3(%arg0: i32) -> (i32, i32) {
    %c0_i32 = arith.constant 0 : i32
    %c0_i32_0 = arith.constant 0 : i32
    %c0_i32_1 = arith.constant 0 : i32
    return %c0_i32, %c0_i32_0 : i32, i32
  }
  func.func @transform_4(%arg0: i32) -> (i32, i32) {
    %c0_i32 = arith.constant 0 : i32
    %c0_i32_0 = arith.constant 0 : i32
    return %arg0, %c0_i32 : i32, i32
  }
  func.func @transform_5(%arg0: i32) -> (i32, i32, i32) {
    %c0_i32 = arith.constant 0 : i32
    %c0_i32_0 = arith.constant 0 : i32
    %c0_i32_1 = arith.constant 0 : i32
    return %arg0, %c0_i32, %c0_i32_0 : i32, i32, i32
  }
}

module attributes {stable_mosaic.version = 11 : i64} {
  func.func @_mm_stats_kernel(%arg0: i32, %arg1: memref<32x16xf32, #tpu.memory_space<vmem>>, %arg2: memref<16x32xbf16, #tpu.memory_space<vmem>>, %arg3: memref<32x32xf32, #tpu.memory_space<vmem>>, %arg4: memref<1x2x32xf32, #tpu.memory_space<vmem>>) attributes {dimension_semantics = [#tpu.dimension_semantics<parallel>], iteration_bounds = array<i64: 1>, scalar_prefetch = 0 : i64, scratch_operands = 0 : i64, tpu.core_type = #tpu.core_type<tc>, window_params = [{transform_indices = @transform_0, window_bounds = array<i64: 32, 16>}, {pipeline_mode = #tpu.pipeline_mode<synchronous>, transform_indices = @transform_1, window_bounds = array<i64: 16, 32>}, {transform_indices = @transform_2, window_bounds = array<i64: 32, 32>}, {transform_indices = @transform_3, window_bounds = array<i64: 1, 2, 32>}]} {
    %c0 = arith.constant 0 : index
    %c0_0 = arith.constant 0 : index
    %0 = vector.load %arg1[%c0, %c0_0] : memref<32x16xf32, #tpu.memory_space<vmem>>, vector<32x16xf32>
    %1 = arith.truncf %0 : vector<32x16xf32> to vector<32x16xbf16>
    %c0_1 = arith.constant 0 : index
    %c0_2 = arith.constant 0 : index
    %2 = vector.load %arg2[%c0_1, %c0_2] : memref<16x32xbf16, #tpu.memory_space<vmem>>, vector<16x32xbf16>
    %cst = arith.constant dense<0.000000e+00> : vector<32x32xf32>
    %3 = tpu.matmul %1, %2, %cst {dimension_numbers = #tpu.dot_dimension_numbers<[1], [0], [0], [1], [0, 0, 1, 1], [], []>} : vector<32x16xbf16>, vector<16x32xbf16>, vector<32x32xf32> -> vector<32x32xf32>
    %c0_3 = arith.constant 0 : index
    %c0_4 = arith.constant 0 : index
    %4 = vector.load %arg3[%c0_3, %c0_4] : memref<32x32xf32, #tpu.memory_space<vmem>>, vector<32x32xf32>
    tpu.vector_store %arg3[%c0_3, %c0_4], %3 {strides = array<i32>} : memref<32x32xf32, #tpu.memory_space<vmem>>, vector<32x32xf32>,
    %cst_5 = arith.constant dense<0.000000e+00> : vector<32xf32>
    %5 = vector.multi_reduction <add>, %3, %cst_5 [0] : vector<32x32xf32> to vector<32xf32>
    %6 = vector.shape_cast %5 : vector<32xf32> to vector<1x32xf32>
    %c0_6 = arith.constant 0 : index
    %c0_7 = arith.constant 0 : index
    %c0_8 = arith.constant 0 : index
    %7 = vector.load %arg4[%c0_6, %c0_7, %c0_8] : memref<1x2x32xf32, #tpu.memory_space<vmem>>, vector<1x1x32xf32>
    %8 = vector.shape_cast %7 : vector<1x1x32xf32> to vector<1x32xf32>
    %9 = vector.shape_cast %6 : vector<1x32xf32> to vector<1x1x32xf32>
    tpu.vector_store %arg4[%c0_6, %c0_7, %c0_8], %9 {strides = array<i32>} : memref<1x2x32xf32, #tpu.memory_space<vmem>>, vector<1x1x32xf32>,
    %10 = arith.mulf %3, %3 : vector<32x32xf32>
    %cst_9 = arith.constant dense<0.000000e+00> : vector<32xf32>
    %11 = vector.multi_reduction <add>, %10, %cst_9 [0] : vector<32x32xf32> to vector<32xf32>
    %12 = vector.shape_cast %11 : vector<32xf32> to vector<1x32xf32>
    %c0_10 = arith.constant 0 : index
    %c1 = arith.constant 1 : index
    %c0_11 = arith.constant 0 : index
    %13 = vector.load %arg4[%c0_10, %c1, %c0_11] : memref<1x2x32xf32, #tpu.memory_space<vmem>>, vector<1x1x32xf32>
    %14 = vector.shape_cast %13 : vector<1x1x32xf32> to vector<1x32xf32>
    %15 = vector.shape_cast %12 : vector<1x32xf32> to vector<1x1x32xf32>
    tpu.vector_store %arg4[%c0_10, %c1, %c0_11], %15 {strides = array<i32>} : memref<1x2x32xf32, #tpu.memory_space<vmem>>, vector<1x1x32xf32>,
    return
  }
  func.func @transform_0(%arg0: i32) -> (i32, i32) {
    %c0_i32 = arith.constant 0 : i32
    %c0_i32_0 = arith.constant 0 : i32
    return %arg0, %c0_i32 : i32, i32
  }
  func.func @transform_1(%arg0: i32) -> (i32, i32) {
    %c0_i32 = arith.constant 0 : i32
    %c0_i32_0 = arith.constant 0 : i32
    %c0_i32_1 = arith.constant 0 : i32
    return %c0_i32, %c0_i32_0 : i32, i32
  }
  func.func @transform_2(%arg0: i32) -> (i32, i32) {
    %c0_i32 = arith.constant 0 : i32
    %c0_i32_0 = arith.constant 0 : i32
    return %arg0, %c0_i32 : i32, i32
  }
  func.func @transform_3(%arg0: i32) -> (i32, i32, i32) {
    %c0_i32 = arith.constant 0 : i32
    %c0_i32_0 = arith.constant 0 : i32
    %c0_i32_1 = arith.constant 0 : i32
    return %arg0, %c0_i32, %c0_i32_0 : i32, i32, i32
  }
}

module attributes {stable_mosaic.version = 11 : i64} {
  func.func @_final_proj_kernel(%arg0: i32, %arg1: memref<32x32xf32, #tpu.memory_space<vmem>>, %arg2: memref<1x32xf32, #tpu.memory_space<vmem>>, %arg3: memref<1x32xf32, #tpu.memory_space<vmem>>, %arg4: memref<32x32xf32, #tpu.memory_space<vmem>>, %arg5: memref<1x32xf32, #tpu.memory_space<vmem>>, %arg6: memref<1x32xf32, #tpu.memory_space<vmem>>, %arg7: memref<32x32xf32, #tpu.memory_space<vmem>>) attributes {dimension_semantics = [#tpu.dimension_semantics<parallel>], iteration_bounds = array<i64: 1>, scalar_prefetch = 0 : i64, scratch_operands = 0 : i64, tpu.core_type = #tpu.core_type<tc>, window_params = [{transform_indices = @transform_0, window_bounds = array<i64: 32, 32>}, {pipeline_mode = #tpu.pipeline_mode<synchronous>, transform_indices = @transform_1, window_bounds = array<i64: 1, 32>}, {pipeline_mode = #tpu.pipeline_mode<synchronous>, transform_indices = @transform_2, window_bounds = array<i64: 1, 32>}, {transform_indices = @transform_3, window_bounds = array<i64: 32, 32>}, {pipeline_mode = #tpu.pipeline_mode<synchronous>, transform_indices = @transform_4, window_bounds = array<i64: 1, 32>}, {pipeline_mode = #tpu.pipeline_mode<synchronous>, transform_indices = @transform_5, window_bounds = array<i64: 1, 32>}, {transform_indices = @transform_6, window_bounds = array<i64: 32, 32>}]} {
    %c0 = arith.constant 0 : index
    %c0_0 = arith.constant 0 : index
    %0 = vector.load %arg1[%c0, %c0_0] : memref<32x32xf32, #tpu.memory_space<vmem>>, vector<32x32xf32>
    %c0_1 = arith.constant 0 : index
    %c0_2 = arith.constant 0 : index
    %1 = vector.load %arg2[%c0_1, %c0_2] : memref<1x32xf32, #tpu.memory_space<vmem>>, vector<1x32xf32>
    %2 = vector.broadcast %1 : vector<1x32xf32> to vector<32x32xf32>
    %3 = arith.mulf %0, %2 : vector<32x32xf32>
    %c0_3 = arith.constant 0 : index
    %c0_4 = arith.constant 0 : index
    %4 = vector.load %arg3[%c0_3, %c0_4] : memref<1x32xf32, #tpu.memory_space<vmem>>, vector<1x32xf32>
    %5 = vector.broadcast %4 : vector<1x32xf32> to vector<32x32xf32>
    %6 = arith.addf %3, %5 : vector<32x32xf32>
    %c0_5 = arith.constant 0 : index
    %c0_6 = arith.constant 0 : index
    %7 = vector.load %arg4[%c0_5, %c0_6] : memref<32x32xf32, #tpu.memory_space<vmem>>, vector<32x32xf32>
    %c0_7 = arith.constant 0 : index
    %c0_8 = arith.constant 0 : index
    %8 = vector.load %arg5[%c0_7, %c0_8] : memref<1x32xf32, #tpu.memory_space<vmem>>, vector<1x32xf32>
    %9 = vector.broadcast %8 : vector<1x32xf32> to vector<32x32xf32>
    %10 = arith.mulf %7, %9 : vector<32x32xf32>
    %11 = arith.addf %6, %10 : vector<32x32xf32>
    %c0_9 = arith.constant 0 : index
    %c0_10 = arith.constant 0 : index
    %12 = vector.load %arg6[%c0_9, %c0_10] : memref<1x32xf32, #tpu.memory_space<vmem>>, vector<1x32xf32>
    %13 = vector.broadcast %12 : vector<1x32xf32> to vector<32x32xf32>
    %14 = arith.addf %11, %13 : vector<32x32xf32>
    %cst = arith.constant 0.000000e+00 : f32
    %15 = vector.broadcast %cst : f32 to vector<32x32xf32>
    %16 = arith.maximumf %14, %15 : vector<32x32xf32>
    %c0_11 = arith.constant 0 : index
    %c0_12 = arith.constant 0 : index
    %17 = vector.load %arg7[%c0_11, %c0_12] : memref<32x32xf32, #tpu.memory_space<vmem>>, vector<32x32xf32>
    tpu.vector_store %arg7[%c0_11, %c0_12], %16 {strides = array<i32>} : memref<32x32xf32, #tpu.memory_space<vmem>>, vector<32x32xf32>,
    return
  }
  func.func @transform_0(%arg0: i32) -> (i32, i32) {
    %c0_i32 = arith.constant 0 : i32
    %c0_i32_0 = arith.constant 0 : i32
    return %arg0, %c0_i32 : i32, i32
  }
  func.func @transform_1(%arg0: i32) -> (i32, i32) {
    %c0_i32 = arith.constant 0 : i32
    %c0_i32_0 = arith.constant 0 : i32
    %c0_i32_1 = arith.constant 0 : i32
    return %c0_i32, %c0_i32_0 : i32, i32
  }
  func.func @transform_2(%arg0: i32) -> (i32, i32) {
    %c0_i32 = arith.constant 0 : i32
    %c0_i32_0 = arith.constant 0 : i32
    %c0_i32_1 = arith.constant 0 : i32
    return %c0_i32, %c0_i32_0 : i32, i32
  }
  func.func @transform_3(%arg0: i32) -> (i32, i32) {
    %c0_i32 = arith.constant 0 : i32
    %c0_i32_0 = arith.constant 0 : i32
    return %arg0, %c0_i32 : i32, i32
  }
  func.func @transform_4(%arg0: i32) -> (i32, i32) {
    %c0_i32 = arith.constant 0 : i32
    %c0_i32_0 = arith.constant 0 : i32
    %c0_i32_1 = arith.constant 0 : i32
    return %c0_i32, %c0_i32_0 : i32, i32
  }
  func.func @transform_5(%arg0: i32) -> (i32, i32) {
    %c0_i32 = arith.constant 0 : i32
    %c0_i32_0 = arith.constant 0 : i32
    %c0_i32_1 = arith.constant 0 : i32
    return %c0_i32, %c0_i32_0 : i32, i32
  }
  func.func @transform_6(%arg0: i32) -> (i32, i32) {
    %c0_i32 = arith.constant 0 : i32
    %c0_i32_0 = arith.constant 0 : i32
    return %arg0, %c0_i32 : i32, i32
  }
}

</mosaic_0001>

<llo_original>
// kernel: block_forward.5
$region0: #{block_forward.5}
  #allocation0 [shape = 'u32[]', space=smem, size = 0x4, offset = 0x4, fixed_abs, tag = 'smem constant byte address 0x4 - core index']
  #allocation1 [shape = 'u32[144,128]{1,0:T(1,128)}', space=vmem, size = 0x12000, scoped, tag = 'internal scratch']
  %s0 = inlined_call_operand.vmem [shape: f32[128,16], index: 0, kind: input, shape index: {}]
  %s1 = inlined_call_operand.vmem [shape: bf16[16,8], index: 1, kind: input, shape index: {}]
  %s2 = inlined_call_operand.vmem [shape: bf16[128,8], index: 2, kind: output, shape index: {0}]
  %s3 = inlined_call_operand.vmem [shape: f32[2,2,8], index: 3, kind: output, shape index: {1}]
  %4 = xla_tuple %s2, %s3
  %s5 = sld [smem:[#allocation0]]
  $region49: #{block_forward.5} parent=0
    _
  %s7 = ssub.s32 1, %s5
  %s8 = scalar_select 0, %s7, %s5
  loop: start=0, step=1, limit=4
  $region2: #{block_forward.5} parent=0 // loop_pre_header
    _
  $region3: #{block_forward.5} parent=0 // loop_header
    %s10 = sphi 0, %s14
    %p11 = scmp.ge.s32.totalorder %s10, 4
    %s20 = sphi 0, %s22
    %s23 = sphi 0, %s20
    %s24 = sphi 0, %s23
    %s40 = sphi 0, %s24
    %s44 = sphi 0, %s44
    %s46 = sphi 0, %s44
    %s47 = sphi 0, %s46
    %s61 = sphi 0, %s47
    %s67 = sphi 0, %s69
    %s70 = sphi 0, %s67
    %s71 = sphi 0, %s70
    %s87 = sphi 0, %s71
    %s93 = sphi 0, %s95
    %s96 = sphi 0, %s93
    %s97 = sphi 0, %s96
    %s113 = sphi 0, %s97
  $region4: #{block_forward.5} parent=0 // loop_header_branch
    %13 = sbr.rel (%p11) target = $region8
  $region5: #{block_forward.5} parent=0 // loop_body
    %s15 = ssub.s32 %s10, 1
    %s16 = ssub.s32 %s10, 2
    %s17 = sadd.s32 %s10, 1
    %s18 = ssub.s32 %s10, %s17
    %p19 = scmp.eq.s32.totalorder %s18, 0
    %s21 = sadd.s32 %s20, 1
    %s22 = scalar_select %p19, %s20, %s21
    %p25 = pneg %p19
    %p26 = scmp.eq.s32.totalorder %s10, 1
    %p27 = por %p25, %p26
    %p28 = scmp.ne.s32.totalorder %s20, %s23
    %p29 = scmp.eq.s32.totalorder %s10, 0
    %p30 = por %p28, %p29
    %p31 = scmp.ne.s32.totalorder %s20, %s23
    %p32 = scmp.eq.s32.totalorder %s15, 1
    %p33 = por %p31, %p32
    %p34 = scmp.ne.s32.totalorder %s23, %s24
    %p35 = scmp.eq.s32.totalorder %s15, 0
    %p36 = por %p34, %p35
    %p37 = scmp.ne.s32.totalorder %s23, %s24
    %p38 = scmp.eq.s32.totalorder %s16, 1
    %p39 = por %p37, %p38
    %p41 = scmp.ne.s32.totalorder %s24, %s40
    %p42 = scmp.eq.s32.totalorder %s16, 0
    %p43 = por %p41, %p42
    %s45 = sadd.s32 %s44, 1
    %p48 = scmp.eq.s32.totalorder %s10, 1
    %p49 = scmp.ne.s32.totalorder %s44, %s46
    %p50 = scmp.eq.s32.totalorder %s10, 0
    %p51 = por %p49, %p50
    %p52 = scmp.ne.s32.totalorder %s44, %s46
    %p53 = scmp.eq.s32.totalorder %s15, 1
    %p54 = por %p52, %p53
    %p55 = scmp.ne.s32.totalorder %s46, %s47
    %p56 = scmp.eq.s32.totalorder %s15, 0
    %p57 = por %p55, %p56
    %p58 = scmp.ne.s32.totalorder %s46, %s47
    %p59 = scmp.eq.s32.totalorder %s16, 1
    %p60 = por %p58, %p59
    %p62 = scmp.ne.s32.totalorder %s47, %s61
    %p63 = scmp.eq.s32.totalorder %s16, 0
    %p64 = por %p62, %p63
    %s65 = ssub.s32 %s10, %s17
    %p66 = scmp.eq.s32.totalorder %s65, 0
    %s68 = sadd.s32 %s67, 1
    %s69 = scalar_select %p66, %s67, %s68
    %p72 = pneg %p66
    %p73 = scmp.eq.s32.totalorder %s10, 1
    %p74 = por %p72, %p73
    %p75 = scmp.ne.s32.totalorder %s67, %s70
    %p76 = scmp.eq.s32.totalorder %s10, 0
    %p77 = por %p75, %p76
    %p78 = scmp.ne.s32.totalorder %s67, %s70
    %p79 = scmp.eq.s32.totalorder %s15, 1
    %p80 = por %p78, %p79
    %p81 = scmp.ne.s32.totalorder %s70, %s71
    %p82 = scmp.eq.s32.totalorder %s15, 0
    %p83 = por %p81, %p82
    %p84 = scmp.ne.s32.totalorder %s70, %s71
    %p85 = scmp.eq.s32.totalorder %s16, 1
    %p86 = por %p84, %p85
    %p88 = scmp.ne.s32.totalorder %s71, %s87
    %p89 = scmp.eq.s32.totalorder %s16, 0
    %p90 = por %p88, %p89
    %s91 = ssub.s32 %s10, %s17
    %p92 = scmp.eq.s32.totalorder %s91, 0
    %s94 = sadd.s32 %s93, 1
    %s95 = scalar_select %p92, %s93, %s94
    %p98 = pneg %p92
    %p99 = scmp.eq.s32.totalorder %s10, 1
    %p100 = por %p98, %p99
    %p101 = scmp.ne.s32.totalorder %s93, %s96
    %p102 = scmp.eq.s32.totalorder %s10, 0
    %p103 = por %p101, %p102
    %p104 = scmp.ne.s32.totalorder %s93, %s96
    %p105 = scmp.eq.s32.totalorder %s15, 1
    %p106 = por %p104, %p105
    %p107 = scmp.ne.s32.totalorder %s96, %s97
    %p108 = scmp.eq.s32.totalorder %s15, 0
    %p109 = por %p107, %p108
    %p110 = scmp.ne.s32.totalorder %s96, %s97
    %p111 = scmp.eq.s32.totalorder %s16, 1
    %p112 = por %p110, %p111
    %p114 = scmp.ne.s32.totalorder %s97, %s113
    %p115 = scmp.eq.s32.totalorder %s16, 0
    %p116 = por %p114, %p115
    %p117 = scmp.le.s32.totalorder 1, %s10
    %p118 = scmp.lt.s32.totalorder %s10, 3
    %p119 = pnand %p117, %p118
    %p120 = pneg %p119
    // Predicated region
    $region9: #{block_forward.5} parent=5 // pred_check
      _
    $region10: #{block_forward.5} parent=5 // pred_check_branch
      %122 = sbr.rel (%p119) target = $region12
    $region11: #{block_forward.5} parent=5 // pred_region
      %s123 = ssub.s32 %s10, 1
      // Predicated region
      $region13: #{block_forward.5} parent=11 // pred_check
        %p124 = pneg %p57
      $region14: #{block_forward.5} parent=11 // pred_check_branch
        %126 = sbr.rel (%p124) target = $region16
      $region15: #{block_forward.5} parent=11 // pred_region
        _
      $region16: #{block_forward.5} parent=11 // pred_fallthru
        _
    $region12: #{block_forward.5} parent=5 // pred_fallthru
      _
    %p127 = scmp.lt.s32.totalorder %s10, 2
    // Predicated region
    $region17: #{block_forward.5} parent=5 // pred_check
      %p128 = pneg %p127
    $region18: #{block_forward.5} parent=5 // pred_check_branch
      %130 = sbr.rel (%p128) target = $region20
    $region19: #{block_forward.5} parent=5 // pred_region
      // Predicated region
      $region21: #{block_forward.5} parent=19 // pred_check
        %p131 = pneg %p30
      $region22: #{block_forward.5} parent=19 // pred_check_branch
        %133 = sbr.rel (%p131) target = $region24
      $region23: #{block_forward.5} parent=19 // pred_region
        %s134 = smul.u32 8, %s10
        %p135 = scmp.lt.s32.totalorder %s134, 15
        %s136 = scalar_select %p135, %s134, 15
        %s137 = smul.addr %s136, 8
        %s138 = scalar_lea.vmem %s0, %s137
        %s139 = smul.u32 8, %s10
      $region24: #{block_forward.5} parent=19 // pred_fallthru
        _
    $region20: #{block_forward.5} parent=5 // pred_fallthru
      _
    %p140 = scmp.le.s32.totalorder 1, %s10
    %p141 = scmp.lt.s32.totalorder %s10, 3
    %p142 = pnand %p140, %p141
    %p143 = pneg %p142
    // Predicated region
    $region25: #{block_forward.5} parent=5 // pred_check
      _
    $region26: #{block_forward.5} parent=5 // pred_check_branch
      %145 = sbr.rel (%p142) target = $region28
    $region27: #{block_forward.5} parent=5 // pred_region
      %s146 = ssub.s32 %s10, 1
      %s147 = smul.u32 8, %s15
      %p148 = scmp.lt.s32.totalorder %s147, 15
      %s149 = scalar_select %p148, %s147, 15
      %s150 = smul.addr %s149, 8
      %s151 = scalar_lea.vmem %s0, %s150
      %p152 = pneg %p36
      %p153 = pneg %p33
      %p154 = pneg %p57
      %p155 = pneg %p54
      %p156 = pneg %p83
      %p157 = pneg %p80
      %s158 = smul.u32 8, %s15
      %p159 = scmp.lt.s32.totalorder %s158, 15
      %s160 = scalar_select %p159, %s158, 15
      %s161 = smul.addr %s160, 4
      %s162 = scalar_lea.vmem %s2, %s161
      %p163 = pneg %p109
      %p164 = pneg %p106
      %p165 = scmp.lt.s32.totalorder %s15, 1
      %s166 = scalar_select %p165, %s15, 1
      %s167 = smul.addr %s166, 2
      %s168 = scalar_lea.vmem %s3, %s167
      %s169 = smul.u32 8, %s15
      %p170 = scmp.lt.s32.totalorder %s169, 15
      %s171 = scalar_select %p170, %s169, 15
      %s172 = smul.addr %s171, 8
      %s173 = scalar_lea.vmem %s0, %s172
      %s174 = smul.u32 8, %s15
      %s175 = smul.u32 8, %s15
      %p176 = scmp.lt.s32.totalorder %s175, 15
      %s177 = scalar_select %p176, %s175, 15
      %s178 = smul.addr %s177, 4
      %s179 = scalar_lea.vmem %s2, %s178
      %s180 = smul.u32 8, %s15
      %p181 = scmp.lt.s32.totalorder %s15, 1
      %s182 = scalar_select %p181, %s15, 1
      %s183 = smul.addr %s182, 2
      %s184 = scalar_lea.vmem %s3, %s183
      %v186 = vld [vmem:[%s173] sm:$0xff]
      %v187 = vld [vmem:[%s173 + $0x8] sm:$0xff]
      %v188 = vld [vmem:[%s173 + $0x10] sm:$0xff]
      %v189 = vld [vmem:[%s173 + $0x18] sm:$0xff]
      %v190 = vld [vmem:[%s173 + $0x20] sm:$0xff]
      %v191 = vld [vmem:[%s173 + $0x28] sm:$0xff]
      %v192 = vld [vmem:[%s173 + $0x30] sm:$0xff]
      %v193 = vld [vmem:[%s173 + $0x38] sm:$0xff]
      %v194 = vpack.c.bf16 %v187, %v186
      %v195 = vpack.c.bf16 %v189, %v188
      %v196 = vpack.c.bf16 %v191, %v190
      %v197 = vpack.c.bf16 %v193, %v192
      %v198 = vld [vmem:[%s1] sm:$0xf]
      %v199 = vld [vmem:[%s1 + $0x4] sm:$0xf]
      %v202 = vunpack.c.l.b16 %v198
      %v203 = vunpack.c.l.b16 %v199
      %v204 = vpack.c.b16 %v203, %v202
      %vm206 = vcmask 130048
      %v208 = vsel %vm206, %v194, 0
      %v211 = vsel %vm206, %v195, 0
      %v214 = vsel %vm206, %v196, 0
      %v217 = vsel %vm206, %v197, 0
      %219 = vmatprep.subr.bf16.mxu0 0
      %220 = vmatpush1.bf16.msra.mxu0 %v204
      %221 = vmatprep.subr.bf16.mxu0 0
      %222 = vmatpush1.bf16.msra.mxu0 0
      %223 = vmatprep.subr.bf16.mxu0 0
      %224 = vmatpush1.bf16.msra.mxu0 0
      %225 = vmatprep.subr.bf16.mxu0 0
      %226 = vmatpush1.bf16.msra.mxu0 0
      %227 = vmatprep.subr.bf16.mxu0 0
      %228 = vmatpush1.bf16.msra.mxu0 0
      %229 = vmatprep.subr.bf16.mxu0 0
      %230 = vmatpush1.bf16.msra.mxu0 0
      %231 = vmatprep.subr.bf16.mxu0 0
      %232 = vmatpush1.bf16.msra.mxu0 0
      %233 = vmatprep.subr.bf16.mxu0 0
      %234 = vmatpush1.bf16.msra.mxu0 0
      %235 = vmatprep.subr.bf16.mxu0 0
      %236 = vmatpush1.bf16.msra.mxu0 0
      %237 = vmatprep.subr.bf16.mxu0 0
      %238 = vmatpush1.bf16.msra.mxu0 0
      %239 = vmatprep.subr.bf16.mxu0 0
      %240 = vmatpush1.bf16.msra.mxu0 0
      %241 = vmatprep.subr.bf16.mxu0 0
      %242 = vmatpush1.bf16.msra.mxu0 0
      %243 = vmatprep.subr.bf16.mxu0 0
      %244 = vmatpush1.bf16.msra.mxu0 0
      %245 = vmatprep.subr.bf16.mxu0 0
      %246 = vmatpush1.bf16.msra.mxu0 0
      %247 = vmatprep.subr.bf16.mxu0 0
      %248 = vmatpush1.bf16.msra.mxu0 0
      %249 = vmatprep.subr.bf16.mxu0 0
      %250 = vmatpush1.bf16.msra.mxu0 0
      %251 = vmatprep.mubr.bf16.mxu0 0
      %252 = vmatmul.mubr.bf16.gmra.mrb[0].mxu0 %v208
      %v253 = vpop.f32.mrb[0].mxu0
      %v254 = vadd.f32 0.0, %v253
      %v255 = vpop.f32.mrb[0].mxu0
      %v256 = vpop.f32.mrb[0].mxu0
      %v257 = vadd.f32 0.0, %v256
      %v258 = vpop.f32.mrb[0].mxu0
      %259 = vmatprep.mubr.bf16.mxu0 0
      %260 = vmatmul.mubr.bf16.gmra.mrb[0].mxu0 %v211
      %v261 = vpop.f32.mrb[0].mxu0
      %v262 = vadd.f32 0.0, %v261
      %v263 = vpop.f32.mrb[0].mxu0
      %v264 = vpop.f32.mrb[0].mxu0
      %v265 = vadd.f32 0.0, %v264
      %v266 = vpop.f32.mrb[0].mxu0
      %267 = vmatprep.mubr.bf16.mxu0 0
      %268 = vmatmul.mubr.bf16.gmra.mrb[0].mxu0 %v214
      %v269 = vpop.f32.mrb[0].mxu0
      %v270 = vadd.f32 0.0, %v269
      %v271 = vpop.f32.mrb[0].mxu0
      %v272 = vpop.f32.mrb[0].mxu0
      %v273 = vadd.f32 0.0, %v272
      %v274 = vpop.f32.mrb[0].mxu0
      %275 = vmatprep.mubr.bf16.mxu0 0
      %276 = vmatmul.mubr.bf16.gmra.mrb[0].mxu0 %v217
      %v277 = vpop.f32.mrb[0].mxu0
      %v278 = vadd.f32 0.0, %v277
      %v279 = vpop.f32.mrb[0].mxu0
      %v280 = vpop.f32.mrb[0].mxu0
      %v281 = vadd.f32 0.0, %v280
      %v282 = vpop.f32.mrb[0].mxu0
      %283 = vdwg.mxu0
      %v284 = vpack.c.bf16 %v257, %v254
      %v285 = vpack.c.bf16 %v265, %v262
      %v286 = vpack.c.bf16 %v273, %v270
      %v287 = vpack.c.bf16 %v281, %v278
      %v292 = vunpack.c.l.b16 %v284
      %v293 = vunpack.c.h.b16 %v284
      %v294 = vunpack.c.l.b16 %v285
      %v295 = vunpack.c.h.b16 %v285
      %v296 = vunpack.c.l.b16 %v286
      %v297 = vunpack.c.h.b16 %v286
      %v298 = vunpack.c.l.b16 %v287
      %v299 = vunpack.c.h.b16 %v287
      %v300 = vpack.c.b16 %v292, %v292
      %v301 = vpack.c.b16 %v293, %v293
      %v302 = vpack.c.b16 %v294, %v294
      %v303 = vpack.c.b16 %v295, %v295
      %v304 = vpack.c.b16 %v296, %v296
      %v305 = vpack.c.b16 %v297, %v297
      %v306 = vpack.c.b16 %v298, %v298
      %v307 = vpack.c.b16 %v299, %v299
      %vm316 = vcmask 60416
      %317 = vst.msk [vmem:[%s179] sm:$0xf] %vm316, %v300
      %318 = vst.msk [vmem:[%s179 + $0x4] sm:$0xf] %vm316, %v301
      %319 = vst.msk [vmem:[%s179 + $0x8] sm:$0xf] %vm316, %v302
      %320 = vst.msk [vmem:[%s179 + $0xc] sm:$0xf] %vm316, %v303
      %321 = vst.msk [vmem:[%s179 + $0x10] sm:$0xf] %vm316, %v304
      %322 = vst.msk [vmem:[%s179 + $0x14] sm:$0xf] %vm316, %v305
      %323 = vst.msk [vmem:[%s179 + $0x18] sm:$0xf] %vm316, %v306
      %324 = vst.msk [vmem:[%s179 + $0x1c] sm:$0xf] %vm316, %v307
      %vm325 = vcmask 64512
      %v326 = vsel %vm325, %v254, 0.0
      %v327 = vsel %vm325, %v257, 0.0
      %v328 = vadd.f32 %v326, %v327
      %v329 = vsel %vm325, %v262, 0.0
      %v330 = vadd.f32 %v328, %v329
      %v331 = vsel %vm325, %v265, 0.0
      %v332 = vadd.f32 %v330, %v331
      %v333 = vsel %vm325, %v270, 0.0
      %v334 = vadd.f32 %v332, %v333
      %v335 = vsel %vm325, %v273, 0.0
      %v336 = vadd.f32 %v334, %v335
      %v337 = vsel %vm325, %v278, 0.0
      %v338 = vadd.f32 %v336, %v337
      %v339 = vsel %vm325, %v281, 0.0
      %v340 = vadd.f32 %v338, %v339
      %v341 = vrot.slane %v340, 4
      %v342 = vadd.f32 %v340, %v341
      %v343 = vrot.slane %v342, 2
      %v344 = vadd.f32 %v342, %v343
      %v345 = vrot.slane %v344, 1
      %v346 = vadd.f32 %v344, %v345
      %vm347 = vcmask 57344
      %348 = vst.msk [vmem:[%s184] sm:$0x1] %vm347, %v346
      %v349 = vmul.f32 %v254, %v254
      %v350 = vmul.f32 %v257, %v257
      %v351 = vmul.f32 %v262, %v262
      %v352 = vmul.f32 %v265, %v265
      %v353 = vmul.f32 %v270, %v270
      %v354 = vmul.f32 %v273, %v273
      %v355 = vmul.f32 %v278, %v278
      %v356 = vmul.f32 %v281, %v281
      %v357 = vsel %vm325, %v349, 0.0
      %v358 = vsel %vm325, %v350, 0.0
      %v359 = vadd.f32 %v357, %v358
      %v360 = vsel %vm325, %v351, 0.0
      %v361 = vadd.f32 %v359, %v360
      %v362 = vsel %vm325, %v352, 0.0
      %v363 = vadd.f32 %v361, %v362
      %v364 = vsel %vm325, %v353, 0.0
      %v365 = vadd.f32 %v363, %v364
      %v366 = vsel %vm325, %v354, 0.0
      %v367 = vadd.f32 %v365, %v366
      %v368 = vsel %vm325, %v355, 0.0
      %v369 = vadd.f32 %v367, %v368
      %v370 = vsel %vm325, %v356, 0.0
      %v371 = vadd.f32 %v369, %v370
      %v372 = vrot.slane %v371, 4
      %v373 = vadd.f32 %v371, %v372
      %v374 = vrot.slane %v373, 2
      %v375 = vadd.f32 %v373, %v374
      %v376 = vrot.slane %v375, 1
      %v377 = vadd.f32 %v375, %v376
      %378 = vst.msk [vmem:[%s184 + $0x1] sm:$0x1] %vm347, %v377
      %s379 = smul.u32 8, %s15
      %p380 = scmp.lt.s32.totalorder %s379, 15
      %s381 = scalar_select %p380, %s379, 15
      %s382 = smul.addr %s381, 4
      %s383 = scalar_lea.vmem %s2, %s382
      %p384 = scmp.lt.s32.totalorder %s15, 1
      %s385 = scalar_select %p384, %s15, 1
      %s386 = smul.addr %s385, 2
      %s387 = scalar_lea.vmem %s3, %s386
      // Predicated region
      $region29: #{block_forward.5} parent=27 // pred_check
        %p388 = pneg %p80
      $region30: #{block_forward.5} parent=27 // pred_check_branch
        %390 = sbr.rel (%p388) target = $region32
      $region31: #{block_forward.5} parent=27 // pred_region
        %s391 = smul.u32 8, %s15
      $region32: #{block_forward.5} parent=27 // pred_fallthru
        _
      // Predicated region
      $region33: #{block_forward.5} parent=27 // pred_check
        %p392 = pneg %p106
      $region34: #{block_forward.5} parent=27 // pred_check_branch
        %394 = sbr.rel (%p392) target = $region36
      $region35: #{block_forward.5} parent=27 // pred_region
        _
      $region36: #{block_forward.5} parent=27 // pred_fallthru
        _
    $region28: #{block_forward.5} parent=5 // pred_fallthru
      _
    %p395 = scmp.le.s32.totalorder 2, %s10
    // Predicated region
    $region37: #{block_forward.5} parent=5 // pred_check
      %p396 = pneg %p395
    $region38: #{block_forward.5} parent=5 // pred_check_branch
      %398 = sbr.rel (%p396) target = $region40
    $region39: #{block_forward.5} parent=5 // pred_region
      %s399 = ssub.s32 %s10, 2
      // Predicated region
      $region41: #{block_forward.5} parent=39 // pred_check
        %p400 = pneg %p86
      $region42: #{block_forward.5} parent=39 // pred_check_branch
        %402 = sbr.rel (%p400) target = $region44
      $region43: #{block_forward.5} parent=39 // pred_region
        %s403 = smul.u32 8, %s16
        %p404 = scmp.lt.s32.totalorder %s403, 15
        %s405 = scalar_select %p404, %s403, 15
        %s406 = smul.addr %s405, 4
        %s407 = scalar_lea.vmem %s2, %s406
      $region44: #{block_forward.5} parent=39 // pred_fallthru
        _
      // Predicated region
      $region45: #{block_forward.5} parent=39 // pred_check
        %p408 = pneg %p112
      $region46: #{block_forward.5} parent=39 // pred_check_branch
        %410 = sbr.rel (%p408) target = $region48
      $region47: #{block_forward.5} parent=39 // pred_region
        %p411 = scmp.lt.s32.totalorder %s16, 1
        %s412 = scalar_select %p411, %s16, 1
        %s413 = smul.addr %s412, 2
        %s414 = scalar_lea.vmem %s3, %s413
      $region48: #{block_forward.5} parent=39 // pred_fallthru
        _
    $region40: #{block_forward.5} parent=5 // pred_fallthru
      _
  $region6: #{block_forward.5} parent=0 // loop_footer
    %s14 = sadd.s32 1, %s10
  $region7: #{block_forward.5} parent=0 // loop_footer_branch
    %9 = sbr.rel target = $region3
  $region8: #{block_forward.5} parent=0 // loop_exit
    _

// kernel: block_forward.7
$region0: #{block_forward.7}
  #allocation0 [shape = 'u32[]', space=smem, size = 0x4, offset = 0x4, fixed_abs, tag = 'smem constant byte address 0x4 - core index']
  #allocation1 [shape = 'u32[144,128]{1,0:T(1,128)}', space=vmem, size = 0x12000, scoped, tag = 'internal scratch']
  %s0 = inlined_call_operand.vmem [shape: bf16[32,8], index: 0, kind: input, shape index: {}]
  %s1 = inlined_call_operand.vmem [shape: f32[1,8], index: 1, kind: input, shape index: {}]
  %s2 = inlined_call_operand.vmem [shape: f32[1,8], index: 2, kind: input, shape index: {}]
  %s3 = inlined_call_operand.vmem [shape: bf16[8,32], index: 3, kind: input, shape index: {}]
  %s4 = inlined_call_operand.vmem [shape: f32[32,32], index: 4, kind: output, shape index: {0}]
  %s5 = inlined_call_operand.vmem [shape: f32[1,2,32], index: 5, kind: output, shape index: {1}]
  %6 = xla_tuple %s4, %s5
  %s7 = sld [smem:[#allocation0]]
  $region34: #{block_forward.7} parent=0
    _
  %s9 = ssub.s32 1, %s7
  %s10 = scalar_select 0, %s9, %s7
  // Predicated region
  $region2: #{block_forward.7} parent=0 // pred_check
    _
  $region3: #{block_forward.7} parent=0 // pred_check_branch
    %12 = sbr.rel (0) target = $region5
  $region4: #{block_forward.7} parent=0 // pred_region
    _
  $region5: #{block_forward.7} parent=0 // pred_fallthru
    _
  // Predicated region
  $region6: #{block_forward.7} parent=0 // pred_check
    _
  $region7: #{block_forward.7} parent=0 // pred_check_branch
    %14 = sbr.rel (0) target = $region9
  $region8: #{block_forward.7} parent=0 // pred_region
    _
  $region9: #{block_forward.7} parent=0 // pred_fallthru
    _
  // Predicated region
  $region10: #{block_forward.7} parent=0 // pred_check
    _
  $region11: #{block_forward.7} parent=0 // pred_check_branch
    %16 = sbr.rel (0) target = $region13
  $region12: #{block_forward.7} parent=0 // pred_region
    _
  $region13: #{block_forward.7} parent=0 // pred_fallthru
    _
  // Predicated region
  $region14: #{block_forward.7} parent=0 // pred_check
    _
  $region15: #{block_forward.7} parent=0 // pred_check_branch
    %18 = sbr.rel (0) target = $region17
  $region16: #{block_forward.7} parent=0 // pred_region
    _
  $region17: #{block_forward.7} parent=0 // pred_fallthru
    _
  %v20 = vld [vmem:[%s0] sm:$0xf]
  %v21 = vld [vmem:[%s0 + $0x4] sm:$0xf]
  %v22 = vld [vmem:[%s0 + $0x8] sm:$0xf]
  %v23 = vld [vmem:[%s0 + $0xc] sm:$0xf]
  %v24 = vunpack.c.l.bf16 %v20
  %v25 = vunpack.c.l.bf16 %v21
  %v26 = vunpack.c.l.bf16 %v22
  %v27 = vunpack.c.l.bf16 %v23
  %v28 = vld [vmem:[%s1] sm:$0x1]
  %v30 = vlaneseq
  %v31 = vshrl.u32 %v30, 7
  %v32 = vsub.s32 0, %v31
  %v33 = vrot.slane %v28, %v32
  %v35 = vmul.f32 %v24, %v33
  %v36 = vmul.f32 %v25, %v33
  %v37 = vmul.f32 %v26, %v33
  %v38 = vmul.f32 %v27, %v33
  %v39 = vld [vmem:[%s2] sm:$0x1]
  %v41 = vlaneseq
  %v42 = vshrl.u32 %v41, 7
  %v43 = vsub.s32 0, %v42
  %v44 = vrot.slane %v39, %v43
  %v46 = vadd.f32 %v35, %v44
  %v47 = vadd.f32 %v36, %v44
  %v48 = vadd.f32 %v37, %v44
  %v49 = vadd.f32 %v38, %v44
  %v50 = vmax.f32 %v46, 0.0
  %v51 = vmax.f32 %v47, 0.0
  %v52 = vmax.f32 %v48, 0.0
  %v53 = vmax.f32 %v49, 0.0
  %v54 = vpack.c.bf16 %v51, %v50
  %v55 = vpack.c.bf16 %v53, %v52
  %v56 = vld [vmem:[%s3] sm:$0xf]
  %vm57 = vcmask 64512
  %v59 = vsel %vm57, %v54, 0
  %v62 = vsel %vm57, %v55, 0
  %vm64 = vcmask 1043456
  %v66 = vsel %vm64, %v56, 0
  %68 = vmatprep.subr.bf16.mxu0 0
  %69 = vmatpush1.bf16.msra.mxu0 %v66
  %70 = vmatprep.subr.bf16.mxu0 0
  %71 = vmatpush1.bf16.msra.mxu0 0
  %72 = vmatprep.subr.bf16.mxu0 0
  %73 = vmatpush1.bf16.msra.mxu0 0
  %74 = vmatprep.subr.bf16.mxu0 0
  %75 = vmatpush1.bf16.msra.mxu0 0
  %76 = vmatprep.subr.bf16.mxu0 0
  %77 = vmatpush1.bf16.msra.mxu0 0
  %78 = vmatprep.subr.bf16.mxu0 0
  %79 = vmatpush1.bf16.msra.mxu0 0
  %80 = vmatprep.subr.bf16.mxu0 0
  %81 = vmatpush1.bf16.msra.mxu0 0
  %82 = vmatprep.subr.bf16.mxu0 0
  %83 = vmatpush1.bf16.msra.mxu0 0
  %84 = vmatprep.subr.bf16.mxu0 0
  %85 = vmatpush1.bf16.msra.mxu0 0
  %86 = vmatprep.subr.bf16.mxu0 0
  %87 = vmatpush1.bf16.msra.mxu0 0
  %88 = vmatprep.subr.bf16.mxu0 0
  %89 = vmatpush1.bf16.msra.mxu0 0
  %90 = vmatprep.subr.bf16.mxu0 0
  %91 = vmatpush1.bf16.msra.mxu0 0
  %92 = vmatprep.subr.bf16.mxu0 0
  %93 = vmatpush1.bf16.msra.mxu0 0
  %94 = vmatprep.subr.bf16.mxu0 0
  %95 = vmatpush1.bf16.msra.mxu0 0
  %96 = vmatprep.subr.bf16.mxu0 0
  %97 = vmatpush1.bf16.msra.mxu0 0
  %98 = vmatprep.subr.bf16.mxu0 0
  %99 = vmatpush1.bf16.msra.mxu0 0
  %100 = vmatprep.mubr.bf16.mxu0 0
  %101 = vmatmul.mubr.bf16.gmra.mrb[0].mxu0 %v59
  %v102 = vpop.f32.mrb[0].mxu0
  %v103 = vadd.f32 0.0, %v102
  %v104 = vpop.f32.mrb[0].mxu0
  %v105 = vpop.f32.mrb[0].mxu0
  %v106 = vadd.f32 0.0, %v105
  %v107 = vpop.f32.mrb[0].mxu0
  %108 = vmatprep.mubr.bf16.mxu0 0
  %109 = vmatmul.mubr.bf16.gmra.mrb[0].mxu0 %v62
  %v110 = vpop.f32.mrb[0].mxu0
  %v111 = vadd.f32 0.0, %v110
  %v112 = vpop.f32.mrb[0].mxu0
  %v113 = vpop.f32.mrb[0].mxu0
  %v114 = vadd.f32 0.0, %v113
  %v115 = vpop.f32.mrb[0].mxu0
  %116 = vdwg.mxu0
  %vm117 = vcmask 261120
  %118 = vst.msk [vmem:[%s4] sm:$0xff] %vm117, %v103
  %119 = vst.msk [vmem:[%s4 + $0x8] sm:$0xff] %vm117, %v106
  %120 = vst.msk [vmem:[%s4 + $0x10] sm:$0xff] %vm117, %v111
  %121 = vst.msk [vmem:[%s4 + $0x18] sm:$0xff] %vm117, %v114
  %v122 = vsel %vm117, %v103, 0.0
  %v123 = vsel %vm117, %v106, 0.0
  %v124 = vadd.f32 %v122, %v123
  %v125 = vsel %vm117, %v111, 0.0
  %v126 = vadd.f32 %v124, %v125
  %v127 = vsel %vm117, %v114, 0.0
  %v128 = vadd.f32 %v126, %v127
  %v129 = vrot.slane %v128, 4
  %v130 = vadd.f32 %v128, %v129
  %v131 = vrot.slane %v130, 2
  %v132 = vadd.f32 %v130, %v131
  %v133 = vrot.slane %v132, 1
  %v134 = vadd.f32 %v132, %v133
  %vm135 = vcmask 253952
  %136 = vst.msk [vmem:[%s5] sm:$0x1] %vm135, %v134
  %v137 = vmul.f32 %v103, %v103
  %v138 = vmul.f32 %v106, %v106
  %v139 = vmul.f32 %v111, %v111
  %v140 = vmul.f32 %v114, %v114
  %v141 = vsel %vm117, %v137, 0.0
  %v142 = vsel %vm117, %v138, 0.0
  %v143 = vadd.f32 %v141, %v142
  %v144 = vsel %vm117, %v139, 0.0
  %v145 = vadd.f32 %v143, %v144
  %v146 = vsel %vm117, %v140, 0.0
  %v147 = vadd.f32 %v145, %v146
  %v148 = vrot.slane %v147, 4
  %v149 = vadd.f32 %v147, %v148
  %v150 = vrot.slane %v149, 2
  %v151 = vadd.f32 %v149, %v150
  %v152 = vrot.slane %v151, 1
  %v153 = vadd.f32 %v151, %v152
  %154 = vst.msk [vmem:[%s5 + $0x1] sm:$0x1] %vm135, %v153
  // Predicated region
  $region18: #{block_forward.7} parent=0 // pred_check
    _
  $region19: #{block_forward.7} parent=0 // pred_check_branch
    %156 = sbr.rel (0) target = $region21
  $region20: #{block_forward.7} parent=0 // pred_region
    _
  $region21: #{block_forward.7} parent=0 // pred_fallthru
    _
  // Predicated region
  $region22: #{block_forward.7} parent=0 // pred_check
    _
  $region23: #{block_forward.7} parent=0 // pred_check_branch
    %158 = sbr.rel (0) target = $region25
  $region24: #{block_forward.7} parent=0 // pred_region
    _
  $region25: #{block_forward.7} parent=0 // pred_fallthru
    _
  // Predicated region
  $region26: #{block_forward.7} parent=0 // pred_check
    _
  $region27: #{block_forward.7} parent=0 // pred_check_branch
    %160 = sbr.rel (0) target = $region29
  $region28: #{block_forward.7} parent=0 // pred_region
    _
  $region29: #{block_forward.7} parent=0 // pred_fallthru
    _
  // Predicated region
  $region30: #{block_forward.7} parent=0 // pred_check
    _
  $region31: #{block_forward.7} parent=0 // pred_check_branch
    %162 = sbr.rel (0) target = $region33
  $region32: #{block_forward.7} parent=0 // pred_region
    _
  $region33: #{block_forward.7} parent=0 // pred_fallthru
    _

// kernel: block_forward.8
$region0: #{block_forward.8}
  #allocation0 [shape = 'u32[]', space=smem, size = 0x4, offset = 0x4, fixed_abs, tag = 'smem constant byte address 0x4 - core index']
  #allocation1 [shape = 'u32[144,128]{1,0:T(1,128)}', space=vmem, size = 0x12000, scoped, tag = 'internal scratch']
  %s0 = inlined_call_operand.vmem [shape: f32[32,16], index: 0, kind: input, shape index: {}]
  %s1 = inlined_call_operand.vmem [shape: bf16[16,32], index: 1, kind: input, shape index: {}]
  %s2 = inlined_call_operand.vmem [shape: f32[32,32], index: 2, kind: output, shape index: {0}]
  %s3 = inlined_call_operand.vmem [shape: f32[1,2,32], index: 3, kind: output, shape index: {1}]
  %4 = xla_tuple %s2, %s3
  %s5 = sld [smem:[#allocation0]]
  $region26: #{block_forward.8} parent=0
    _
  %s7 = ssub.s32 1, %s5
  %s8 = scalar_select 0, %s7, %s5
  // Predicated region
  $region2: #{block_forward.8} parent=0 // pred_check
    _
  $region3: #{block_forward.8} parent=0 // pred_check_branch
    %10 = sbr.rel (0) target = $region5
  $region4: #{block_forward.8} parent=0 // pred_region
    _
  $region5: #{block_forward.8} parent=0 // pred_fallthru
    _
  // Predicated region
  $region6: #{block_forward.8} parent=0 // pred_check
    _
  $region7: #{block_forward.8} parent=0 // pred_check_branch
    %12 = sbr.rel (0) target = $region9
  $region8: #{block_forward.8} parent=0 // pred_region
    _
  $region9: #{block_forward.8} parent=0 // pred_fallthru
    _
  %v14 = vld [vmem:[%s0] sm:$0xff]
  %v15 = vld [vmem:[%s0 + $0x8] sm:$0xff]
  %v16 = vld [vmem:[%s0 + $0x10] sm:$0xff]
  %v17 = vld [vmem:[%s0 + $0x18] sm:$0xff]
  %v18 = vpack.c.bf16 %v15, %v14
  %v19 = vpack.c.bf16 %v17, %v16
  %v20 = vld [vmem:[%s1] sm:$0xf]
  %v21 = vld [vmem:[%s1 + $0x4] sm:$0xf]
  %v24 = vunpack.c.l.b16 %v20
  %v25 = vunpack.c.l.b16 %v21
  %v26 = vpack.c.b16 %v25, %v24
  %vm28 = vcmask 130048
  %v30 = vsel %vm28, %v18, 0
  %v33 = vsel %vm28, %v19, 0
  %35 = vmatprep.subr.bf16.mxu0 0
  %36 = vmatpush1.bf16.msra.mxu0 %v26
  %37 = vmatprep.subr.bf16.mxu0 0
  %38 = vmatpush1.bf16.msra.mxu0 0
  %39 = vmatprep.subr.bf16.mxu0 0
  %40 = vmatpush1.bf16.msra.mxu0 0
  %41 = vmatprep.subr.bf16.mxu0 0
  %42 = vmatpush1.bf16.msra.mxu0 0
  %43 = vmatprep.subr.bf16.mxu0 0
  %44 = vmatpush1.bf16.msra.mxu0 0
  %45 = vmatprep.subr.bf16.mxu0 0
  %46 = vmatpush1.bf16.msra.mxu0 0
  %47 = vmatprep.subr.bf16.mxu0 0
  %48 = vmatpush1.bf16.msra.mxu0 0
  %49 = vmatprep.subr.bf16.mxu0 0
  %50 = vmatpush1.bf16.msra.mxu0 0
  %51 = vmatprep.subr.bf16.mxu0 0
  %52 = vmatpush1.bf16.msra.mxu0 0
  %53 = vmatprep.subr.bf16.mxu0 0
  %54 = vmatpush1.bf16.msra.mxu0 0
  %55 = vmatprep.subr.bf16.mxu0 0
  %56 = vmatpush1.bf16.msra.mxu0 0
  %57 = vmatprep.subr.bf16.mxu0 0
  %58 = vmatpush1.bf16.msra.mxu0 0
  %59 = vmatprep.subr.bf16.mxu0 0
  %60 = vmatpush1.bf16.msra.mxu0 0
  %61 = vmatprep.subr.bf16.mxu0 0
  %62 = vmatpush1.bf16.msra.mxu0 0
  %63 = vmatprep.subr.bf16.mxu0 0
  %64 = vmatpush1.bf16.msra.mxu0 0
  %65 = vmatprep.subr.bf16.mxu0 0
  %66 = vmatpush1.bf16.msra.mxu0 0
  %67 = vmatprep.mubr.bf16.mxu0 0
  %68 = vmatmul.mubr.bf16.gmra.mrb[0].mxu0 %v30
  %v69 = vpop.f32.mrb[0].mxu0
  %v70 = vadd.f32 0.0, %v69
  %v71 = vpop.f32.mrb[0].mxu0
  %v72 = vpop.f32.mrb[0].mxu0
  %v73 = vadd.f32 0.0, %v72
  %v74 = vpop.f32.mrb[0].mxu0
  %75 = vmatprep.mubr.bf16.mxu0 0
  %76 = vmatmul.mubr.bf16.gmra.mrb[0].mxu0 %v33
  %v77 = vpop.f32.mrb[0].mxu0
  %v78 = vadd.f32 0.0, %v77
  %v79 = vpop.f32.mrb[0].mxu0
  %v80 = vpop.f32.mrb[0].mxu0
  %v81 = vadd.f32 0.0, %v80
  %v82 = vpop.f32.mrb[0].mxu0
  %83 = vdwg.mxu0
  %vm84 = vcmask 261120
  %85 = vst.msk [vmem:[%s2] sm:$0xff] %vm84, %v70
  %86 = vst.msk [vmem:[%s2 + $0x8] sm:$0xff] %vm84, %v73
  %87 = vst.msk [vmem:[%s2 + $0x10] sm:$0xff] %vm84, %v78
  %88 = vst.msk [vmem:[%s2 + $0x18] sm:$0xff] %vm84, %v81
  %v89 = vsel %vm84, %v70, 0.0
  %v90 = vsel %vm84, %v73, 0.0
  %v91 = vadd.f32 %v89, %v90
  %v92 = vsel %vm84, %v78, 0.0
  %v93 = vadd.f32 %v91, %v92
  %v94 = vsel %vm84, %v81, 0.0
  %v95 = vadd.f32 %v93, %v94
  %v96 = vrot.slane %v95, 4
  %v97 = vadd.f32 %v95, %v96
  %v98 = vrot.slane %v97, 2
  %v99 = vadd.f32 %v97, %v98
  %v100 = vrot.slane %v99, 1
  %v101 = vadd.f32 %v99, %v100
  %vm102 = vcmask 253952
  %103 = vst.msk [vmem:[%s3] sm:$0x1] %vm102, %v101
  %v104 = vmul.f32 %v70, %v70
  %v105 = vmul.f32 %v73, %v73
  %v106 = vmul.f32 %v78, %v78
  %v107 = vmul.f32 %v81, %v81
  %v108 = vsel %vm84, %v104, 0.0
  %v109 = vsel %vm84, %v105, 0.0
  %v110 = vadd.f32 %v108, %v109
  %v111 = vsel %vm84, %v106, 0.0
  %v112 = vadd.f32 %v110, %v111
  %v113 = vsel %vm84, %v107, 0.0
  %v114 = vadd.f32 %v112, %v113
  %v115 = vrot.slane %v114, 4
  %v116 = vadd.f32 %v114, %v115
  %v117 = vrot.slane %v116, 2
  %v118 = vadd.f32 %v116, %v117
  %v119 = vrot.slane %v118, 1
  %v120 = vadd.f32 %v118, %v119
  %121 = vst.msk [vmem:[%s3 + $0x1] sm:$0x1] %vm102, %v120
  // Predicated region
  $region10: #{block_forward.8} parent=0 // pred_check
    _
  $region11: #{block_forward.8} parent=0 // pred_check_branch
    %123 = sbr.rel (0) target = $region13
  $region12: #{block_forward.8} parent=0 // pred_region
    _
  $region13: #{block_forward.8} parent=0 // pred_fallthru
    _
  // Predicated region
  $region14: #{block_forward.8} parent=0 // pred_check
    _
  $region15: #{block_forward.8} parent=0 // pred_check_branch
    %125 = sbr.rel (0) target = $region17
  $region16: #{block_forward.8} parent=0 // pred_region
    _
  $region17: #{block_forward.8} parent=0 // pred_fallthru
    _
  // Predicated region
  $region18: #{block_forward.8} parent=0 // pred_check
    _
  $region19: #{block_forward.8} parent=0 // pred_check_branch
    %127 = sbr.rel (0) target = $region21
  $region20: #{block_forward.8} parent=0 // pred_region
    _
  $region21: #{block_forward.8} parent=0 // pred_fallthru
    _
  // Predicated region
  $region22: #{block_forward.8} parent=0 // pred_check
    _
  $region23: #{block_forward.8} parent=0 // pred_check_branch
    %129 = sbr.rel (0) target = $region25
  $region24: #{block_forward.8} parent=0 // pred_region
    _
  $region25: #{block_forward.8} parent=0 // pred_fallthru
    _

// kernel: block_forward.6
$region0: #{block_forward.6}
  #allocation0 [shape = 'u32[]', space=smem, size = 0x4, offset = 0x4, fixed_abs, tag = 'smem constant byte address 0x4 - core index']
  #allocation1 [shape = 'u32[144,128]{1,0:T(1,128)}', space=vmem, size = 0x12000, scoped, tag = 'internal scratch']
  #allocation2 [shape = 'bf16[4,26,8]{2,1,0:T(8,128)(2,1)}', space=vmem, size = 0x8000, scoped, tag = 'scratch operand']
  %s0 = inlined_call_operand.vmem [shape: bf16[2,4,16,8], index: 0, kind: input, shape index: {}]
  %s1 = inlined_call_operand.vmem [shape: f32[1,8], index: 1, kind: input, shape index: {}]
  %s2 = inlined_call_operand.vmem [shape: f32[1,8], index: 2, kind: input, shape index: {}]
  %s3 = inlined_call_operand.vmem [shape: bf16[9,8,8], index: 3, kind: input, shape index: {}]
  %s4 = inlined_call_operand.vmem [shape: bf16[16,1], index: 4, kind: input, shape index: {}]
  %s5 = inlined_call_operand.vmem [shape: bf16[16,1], index: 5, kind: input, shape index: {}]
  %s6 = inlined_call_operand.vmem [shape: bf16[2,16,8], index: 6, kind: output, shape index: {0}]
  %s7 = inlined_call_operand.vmem [shape: f32[2,2,8], index: 7, kind: output, shape index: {1}]
  %8 = xla_tuple %s6, %s7
  %s9 = sld [smem:[#allocation0]]
  $region65: #{block_forward.6} parent=0
    _
  %s11 = ssub.s32 1, %s9
  %s12 = scalar_select 0, %s11, %s9
  loop: start=0, step=1, limit=4
  $region2: #{block_forward.6} parent=0 // loop_pre_header
    _
  $region3: #{block_forward.6} parent=0 // loop_header
    %s14 = sphi 0, %s18
    %p15 = scmp.ge.s32.totalorder %s14, 4
    %s24 = sphi 0, %s26
    %s27 = sphi 0, %s24
    %s28 = sphi 0, %s27
    %s44 = sphi 0, %s28
    %s48 = sphi 0, %s48
    %s50 = sphi 0, %s48
    %s51 = sphi 0, %s50
    %s65 = sphi 0, %s51
    %s69 = sphi 0, %s69
    %s71 = sphi 0, %s69
    %s72 = sphi 0, %s71
    %s86 = sphi 0, %s72
    %s90 = sphi 0, %s90
    %s92 = sphi 0, %s90
    %s93 = sphi 0, %s92
    %s107 = sphi 0, %s93
    %s111 = sphi 0, %s111
    %s113 = sphi 0, %s111
    %s114 = sphi 0, %s113
    %s128 = sphi 0, %s114
    %s132 = sphi 0, %s132
    %s134 = sphi 0, %s132
    %s135 = sphi 0, %s134
    %s149 = sphi 0, %s135
    %s155 = sphi 0, %s157
    %s158 = sphi 0, %s155
    %s159 = sphi 0, %s158
    %s175 = sphi 0, %s159
    %s181 = sphi 0, %s183
    %s184 = sphi 0, %s181
    %s185 = sphi 0, %s184
    %s201 = sphi 0, %s185
  $region4: #{block_forward.6} parent=0 // loop_header_branch
    %17 = sbr.rel (%p15) target = $region8
  $region5: #{block_forward.6} parent=0 // loop_body
    %s19 = ssub.s32 %s14, 1
    %s20 = ssub.s32 %s14, 2
    %s21 = sadd.s32 %s14, 1
    %s22 = ssub.s32 %s14, %s21
    %p23 = scmp.eq.s32.totalorder %s22, 0
    %s25 = sadd.s32 %s24, 1
    %s26 = scalar_select %p23, %s24, %s25
    %p29 = pneg %p23
    %p30 = scmp.eq.s32.totalorder %s14, 1
    %p31 = por %p29, %p30
    %p32 = scmp.ne.s32.totalorder %s24, %s27
    %p33 = scmp.eq.s32.totalorder %s14, 0
    %p34 = por %p32, %p33
    %p35 = scmp.ne.s32.totalorder %s24, %s27
    %p36 = scmp.eq.s32.totalorder %s19, 1
    %p37 = por %p35, %p36
    %p38 = scmp.ne.s32.totalorder %s27, %s28
    %p39 = scmp.eq.s32.totalorder %s19, 0
    %p40 = por %p38, %p39
    %p41 = scmp.ne.s32.totalorder %s27, %s28
    %p42 = scmp.eq.s32.totalorder %s20, 1
    %p43 = por %p41, %p42
    %p45 = scmp.ne.s32.totalorder %s28, %s44
    %p46 = scmp.eq.s32.totalorder %s20, 0
    %p47 = por %p45, %p46
    %s49 = sadd.s32 %s48, 1
    %p52 = scmp.eq.s32.totalorder %s14, 1
    %p53 = scmp.ne.s32.totalorder %s48, %s50
    %p54 = scmp.eq.s32.totalorder %s14, 0
    %p55 = por %p53, %p54
    %p56 = scmp.ne.s32.totalorder %s48, %s50
    %p57 = scmp.eq.s32.totalorder %s19, 1
    %p58 = por %p56, %p57
    %p59 = scmp.ne.s32.totalorder %s50, %s51
    %p60 = scmp.eq.s32.totalorder %s19, 0
    %p61 = por %p59, %p60
    %p62 = scmp.ne.s32.totalorder %s50, %s51
    %p63 = scmp.eq.s32.totalorder %s20, 1
    %p64 = por %p62, %p63
    %p66 = scmp.ne.s32.totalorder %s51, %s65
    %p67 = scmp.eq.s32.totalorder %s20, 0
    %p68 = por %p66, %p67
    %s70 = sadd.s32 %s69, 1
    %p73 = scmp.eq.s32.totalorder %s14, 1
    %p74 = scmp.ne.s32.totalorder %s69, %s71
    %p75 = scmp.eq.s32.totalorder %s14, 0
    %p76 = por %p74, %p75
    %p77 = scmp.ne.s32.totalorder %s69, %s71
    %p78 = scmp.eq.s32.totalorder %s19, 1
    %p79 = por %p77, %p78
    %p80 = scmp.ne.s32.totalorder %s71, %s72
    %p81 = scmp.eq.s32.totalorder %s19, 0
    %p82 = por %p80, %p81
    %p83 = scmp.ne.s32.totalorder %s71, %s72
    %p84 = scmp.eq.s32.totalorder %s20, 1
    %p85 = por %p83, %p84
    %p87 = scmp.ne.s32.totalorder %s72, %s86
    %p88 = scmp.eq.s32.totalorder %s20, 0
    %p89 = por %p87, %p88
    %s91 = sadd.s32 %s90, 1
    %p94 = scmp.eq.s32.totalorder %s14, 1
    %p95 = scmp.ne.s32.totalorder %s90, %s92
    %p96 = scmp.eq.s32.totalorder %s14, 0
    %p97 = por %p95, %p96
    %p98 = scmp.ne.s32.totalorder %s90, %s92
    %p99 = scmp.eq.s32.totalorder %s19, 1
    %p100 = por %p98, %p99
    %p101 = scmp.ne.s32.totalorder %s92, %s93
    %p102 = scmp.eq.s32.totalorder %s19, 0
    %p103 = por %p101, %p102
    %p104 = scmp.ne.s32.totalorder %s92, %s93
    %p105 = scmp.eq.s32.totalorder %s20, 1
    %p106 = por %p104, %p105
    %p108 = scmp.ne.s32.totalorder %s93, %s107
    %p109 = scmp.eq.s32.totalorder %s20, 0
    %p110 = por %p108, %p109
    %s112 = sadd.s32 %s111, 1
    %p115 = scmp.eq.s32.totalorder %s14, 1
    %p116 = scmp.ne.s32.totalorder %s111, %s113
    %p117 = scmp.eq.s32.totalorder %s14, 0
    %p118 = por %p116, %p117
    %p119 = scmp.ne.s32.totalorder %s111, %s113
    %p120 = scmp.eq.s32.totalorder %s19, 1
    %p121 = por %p119, %p120
    %p122 = scmp.ne.s32.totalorder %s113, %s114
    %p123 = scmp.eq.s32.totalorder %s19, 0
    %p124 = por %p122, %p123
    %p125 = scmp.ne.s32.totalorder %s113, %s114
    %p126 = scmp.eq.s32.totalorder %s20, 1
    %p127 = por %p125, %p126
    %p129 = scmp.ne.s32.totalorder %s114, %s128
    %p130 = scmp.eq.s32.totalorder %s20, 0
    %p131 = por %p129, %p130
    %s133 = sadd.s32 %s132, 1
    %p136 = scmp.eq.s32.totalorder %s14, 1
    %p137 = scmp.ne.s32.totalorder %s132, %s134
    %p138 = scmp.eq.s32.totalorder %s14, 0
    %p139 = por %p137, %p138
    %p140 = scmp.ne.s32.totalorder %s132, %s134
    %p141 = scmp.eq.s32.totalorder %s19, 1
    %p142 = por %p140, %p141
    %p143 = scmp.ne.s32.totalorder %s134, %s135
    %p144 = scmp.eq.s32.totalorder %s19, 0
    %p145 = por %p143, %p144
    %p146 = scmp.ne.s32.totalorder %s134, %s135
    %p147 = scmp.eq.s32.totalorder %s20, 1
    %p148 = por %p146, %p147
    %p150 = scmp.ne.s32.totalorder %s135, %s149
    %p151 = scmp.eq.s32.totalorder %s20, 0
    %p152 = por %p150, %p151
    %s153 = ssub.s32 %s14, %s21
    %p154 = scmp.eq.s32.totalorder %s153, 0
    %s156 = sadd.s32 %s155, 1
    %s157 = scalar_select %p154, %s155, %s156
    %p160 = pneg %p154
    %p161 = scmp.eq.s32.totalorder %s14, 1
    %p162 = por %p160, %p161
    %p163 = scmp.ne.s32.totalorder %s155, %s158
    %p164 = scmp.eq.s32.totalorder %s14, 0
    %p165 = por %p163, %p164
    %p166 = scmp.ne.s32.totalorder %s155, %s158
    %p167 = scmp.eq.s32.totalorder %s19, 1
    %p168 = por %p166, %p167
    %p169 = scmp.ne.s32.totalorder %s158, %s159
    %p170 = scmp.eq.s32.totalorder %s19, 0
    %p171 = por %p169, %p170
    %p172 = scmp.ne.s32.totalorder %s158, %s159
    %p173 = scmp.eq.s32.totalorder %s20, 1
    %p174 = por %p172, %p173
    %p176 = scmp.ne.s32.totalorder %s159, %s175
    %p177 = scmp.eq.s32.totalorder %s20, 0
    %p178 = por %p176, %p177
    %s179 = ssub.s32 %s14, %s21
    %p180 = scmp.eq.s32.totalorder %s179, 0
    %s182 = sadd.s32 %s181, 1
    %s183 = scalar_select %p180, %s181, %s182
    %p186 = pneg %p180
    %p187 = scmp.eq.s32.totalorder %s14, 1
    %p188 = por %p186, %p187
    %p189 = scmp.ne.s32.totalorder %s181, %s184
    %p190 = scmp.eq.s32.totalorder %s14, 0
    %p191 = por %p189, %p190
    %p192 = scmp.ne.s32.totalorder %s181, %s184
    %p193 = scmp.eq.s32.totalorder %s19, 1
    %p194 = por %p192, %p193
    %p195 = scmp.ne.s32.totalorder %s184, %s185
    %p196 = scmp.eq.s32.totalorder %s19, 0
    %p197 = por %p195, %p196
    %p198 = scmp.ne.s32.totalorder %s184, %s185
    %p199 = scmp.eq.s32.totalorder %s20, 1
    %p200 = por %p198, %p199
    %p202 = scmp.ne.s32.totalorder %s185, %s201
    %p203 = scmp.eq.s32.totalorder %s20, 0
    %p204 = por %p202, %p203
    %p205 = scmp.le.s32.totalorder 1, %s14
    %p206 = scmp.lt.s32.totalorder %s14, 3
    %p207 = pnand %p205, %p206
    %p208 = pneg %p207
    // Predicated region
    $region9: #{block_forward.6} parent=5 // pred_check
      _
    $region10: #{block_forward.6} parent=5 // pred_check_branch
      %210 = sbr.rel (%p207) target = $region12
    $region11: #{block_forward.6} parent=5 // pred_region
      %s211 = ssub.s32 %s14, 1
      // Predicated region
      $region13: #{block_forward.6} parent=11 // pred_check
        %p212 = pneg %p61
      $region14: #{block_forward.6} parent=11 // pred_check_branch
        %214 = sbr.rel (%p212) target = $region16
      $region15: #{block_forward.6} parent=11 // pred_region
        _
      $region16: #{block_forward.6} parent=11 // pred_fallthru
        _
      // Predicated region
      $region17: #{block_forward.6} parent=11 // pred_check
        %p215 = pneg %p82
      $region18: #{block_forward.6} parent=11 // pred_check_branch
        %217 = sbr.rel (%p215) target = $region20
      $region19: #{block_forward.6} parent=11 // pred_region
        _
      $region20: #{block_forward.6} parent=11 // pred_fallthru
        _
      // Predicated region
      $region21: #{block_forward.6} parent=11 // pred_check
        %p218 = pneg %p103
      $region22: #{block_forward.6} parent=11 // pred_check_branch
        %220 = sbr.rel (%p218) target = $region24
      $region23: #{block_forward.6} parent=11 // pred_region
        _
      $region24: #{block_forward.6} parent=11 // pred_fallthru
        _
      // Predicated region
      $region25: #{block_forward.6} parent=11 // pred_check
        %p221 = pneg %p124
      $region26: #{block_forward.6} parent=11 // pred_check_branch
        %223 = sbr.rel (%p221) target = $region28
      $region27: #{block_forward.6} parent=11 // pred_region
        _
      $region28: #{block_forward.6} parent=11 // pred_fallthru
        _
      // Predicated region
      $region29: #{block_forward.6} parent=11 // pred_check
        %p224 = pneg %p145
      $region30: #{block_forward.6} parent=11 // pred_check_branch
        %226 = sbr.rel (%p224) target = $region32
      $region31: #{block_forward.6} parent=11 // pred_region
        _
      $region32: #{block_forward.6} parent=11 // pred_fallthru
        _
    $region12: #{block_forward.6} parent=5 // pred_fallthru
      _
    %p227 = scmp.lt.s32.totalorder %s14, 2
    // Predicated region
    $region33: #{block_forward.6} parent=5 // pred_check
      %p228 = pneg %p227
    $region34: #{block_forward.6} parent=5 // pred_check_branch
      %230 = sbr.rel (%p228) target = $region36
    $region35: #{block_forward.6} parent=5 // pred_region
      // Predicated region
      $region37: #{block_forward.6} parent=35 // pred_check
        %p231 = pneg %p34
      $region38: #{block_forward.6} parent=35 // pred_check_branch
        %233 = sbr.rel (%p231) target = $region40
      $region39: #{block_forward.6} parent=35 // pred_region
        %p234 = scmp.lt.s32.totalorder %s14, 1
        %s235 = scalar_select %p234, %s14, 1
        %s236 = smul.addr %s235, 8
        %s237 = smul.addr %s236, 4
        %s238 = scalar_lea.vmem %s0, %s237
      $region40: #{block_forward.6} parent=35 // pred_fallthru
        _
    $region36: #{block_forward.6} parent=5 // pred_fallthru
      _
    %p239 = scmp.le.s32.totalorder 1, %s14
    %p240 = scmp.lt.s32.totalorder %s14, 3
    %p241 = pnand %p239, %p240
    %p242 = pneg %p241
    // Predicated region
    $region41: #{block_forward.6} parent=5 // pred_check
      _
    $region42: #{block_forward.6} parent=5 // pred_check_branch
      %244 = sbr.rel (%p241) target = $region44
    $region43: #{block_forward.6} parent=5 // pred_region
      %s245 = ssub.s32 %s14, 1
      %p246 = scmp.lt.s32.totalorder %s19, 1
      %s247 = scalar_select %p246, %s19, 1
      %s248 = smul.addr %s247, 8
      %s249 = smul.addr %s248, 4
      %s250 = scalar_lea.vmem %s0, %s249
      %p251 = pneg %p40
      %p252 = pneg %p37
      %p253 = pneg %p61
      %p254 = pneg %p58
      %p255 = pneg %p82
      %p256 = pneg %p79
      %p257 = pneg %p103
      %p258 = pneg %p100
      %p259 = pneg %p124
      %p260 = pneg %p121
      %p261 = pneg %p145
      %p262 = pneg %p142
      %p263 = pneg %p171
      %p264 = pneg %p168
      %p265 = scmp.lt.s32.totalorder %s19, 1
      %s266 = scalar_select %p265, %s19, 1
      %s267 = smul.addr %s266, 2
      %s268 = smul.addr %s267, 4
      %s269 = scalar_lea.vmem %s6, %s268
      %p270 = pneg %p197
      %p271 = pneg %p194
      %p272 = scmp.lt.s32.totalorder %s19, 1
      %s273 = scalar_select %p272, %s19, 1
      %s274 = smul.addr %s273, 2
      %s275 = scalar_lea.vmem %s7, %s274
      %p276 = scmp.lt.s32.totalorder %s19, 1
      %s277 = scalar_select %p276, %s19, 1
      %s278 = smul.addr %s277, 8
      %s279 = smul.addr %s278, 4
      %s280 = scalar_lea.vmem %s0, %s279
      %p281 = scmp.lt.s32.totalorder %s19, 1
      %s282 = scalar_select %p281, %s19, 1
      %s283 = smul.addr %s282, 2
      %s284 = smul.addr %s283, 4
      %s285 = scalar_lea.vmem %s6, %s284
      %p286 = scmp.lt.s32.totalorder %s19, 1
      %s287 = scalar_select %p286, %s19, 1
      %s288 = smul.addr %s287, 2
      %s289 = scalar_lea.vmem %s7, %s288
      %v291 = vld [vmem:[%s1] sm:$0x1]
      %v292 = vld [vmem:[%s2] sm:$0x1]
      %vm293 = vcmask 60416
      %294 = vst.msk [vmem:[#allocation2] sm:$0xf] %vm293, 0
      %295 = vst.msk [vmem:[#allocation2 + $0x4] sm:$0xf] %vm293, 0
      %296 = vst.msk [vmem:[#allocation2 + $0x8] sm:$0xf] %vm293, 0
      %vm297 = vcmask 57344
      %298 = vst.msk [vmem:[#allocation2 + $0xc] sm:$0x1] %vm297, 0
      %299 = vst.msk [vmem:[#allocation2 + $0x10] sm:$0xf] %vm293, 0
      %300 = vst.msk [vmem:[#allocation2 + $0x14] sm:$0xf] %vm293, 0
      %301 = vst.msk [vmem:[#allocation2 + $0x18] sm:$0xf] %vm293, 0
      %302 = vst.msk [vmem:[#allocation2 + $0x1c] sm:$0x1] %vm297, 0
      %303 = vst.msk [vmem:[#allocation2 + $0x20] sm:$0xf] %vm293, 0
      %304 = vst.msk [vmem:[#allocation2 + $0x24] sm:$0xf] %vm293, 0
      %305 = vst.msk [vmem:[#allocation2 + $0x28] sm:$0xf] %vm293, 0
      %306 = vst.msk [vmem:[#allocation2 + $0x2c] sm:$0x1] %vm297, 0
      %307 = vst.msk [vmem:[#allocation2 + $0x30] sm:$0xf] %vm293, 0
      %308 = vst.msk [vmem:[#allocation2 + $0x34] sm:$0xf] %vm293, 0
      %309 = vst.msk [vmem:[#allocation2 + $0x38] sm:$0xf] %vm293, 0
      %310 = vst.msk [vmem:[#allocation2 + $0x3c] sm:$0x1] %vm297, 0
      %v311 = vld [vmem:[%s280] sm:$0xf]
      %v312 = vld [vmem:[%s280 + $0x4] sm:$0xf]
      %v313 = vunpack.c.l.bf16 %v311
      %v314 = vunpack.c.l.bf16 %v312
      %v316 = vlaneseq
      %v317 = vshrl.u32 %v316, 7
      %v318 = vsub.s32 0, %v317
      %v319 = vrot.slane %v291, %v318
      %v321 = vmul.f32 %v313, %v319
      %v322 = vmul.f32 %v314, %v319
      %v324 = vlaneseq
      %v325 = vshrl.u32 %v324, 7
      %v326 = vsub.s32 0, %v325
      %v327 = vrot.slane %v292, %v326
      %v329 = vadd.f32 %v321, %v327
      %v330 = vadd.f32 %v322, %v327
      %v331 = vmax.f32 %v329, 0.0
      %v332 = vmax.f32 %v330, 0.0
      %v333 = vpack.c.bf16 %v332, %v331
      %v335 = vunpack.c.l.b16 %v333
      %v336 = vunpack.c.h.b16 %v333
      %v337 = vpack.c.b16 %v335, %v335
      %v338 = vpack.c.b16 %v336, %v336
      %vm339 = vsmask.f32 2304
      %vm340 = vsmask.f32 6416
      %vm341 = vmor %vm339, %vm340
      %v343 = vshrl.u32 %v337, 16
      %v345 = vrot.slane %v343, 5
      %v346 = vshll.u32 %v337, 16
      %v348 = vrot.slane %v346, 6
      %v349 = vor.u32 %v345, %v348
      %v350 = vrot.slane %v349, 4
      %v352 = vshrl.u32 %v338, 16
      %v354 = vrot.slane %v352, 5
      %v355 = vshll.u32 %v338, 16
      %v357 = vrot.slane %v355, 6
      %v358 = vor.u32 %v354, %v357
      %v359 = vsel %vm341, %v350, %v358
      %v360 = vrot.slane %v358, 4
      %vm364 = vcmask 60418
      %vm365 = vsmask.f32 7946
      %vm366 = vmand %vm364, %vm365
      %v367 = vld [vmem:[#allocation2] sm:$0xc]
      %v368 = vsel %vm366, %v349, %v367
      %369 = vst [vmem:[#allocation2] sm:$0xc] %v368
      %370 = vst.msk [vmem:[#allocation2 + $0x4] sm:$0xf] %vm293, %v359
      %vm371 = vcmask 59392
      %vm372 = vmand %vm371, %vm339
      %v373 = vld [vmem:[#allocation2 + $0x8] sm:$0x7]
      %v374 = vsel %vm372, %v360, %v373
      %375 = vst [vmem:[#allocation2 + $0x8] sm:$0x7] %v374
      %s376 = scalar_lea.vmem %s280, 8
      %v377 = vld [vmem:[%s376] sm:$0xf]
      %v378 = vld [vmem:[%s376 + $0x4] sm:$0xf]
      %v379 = vunpack.c.l.bf16 %v377
      %v380 = vunpack.c.l.bf16 %v378
      %v381 = vmul.f32 %v379, %v319
      %v382 = vmul.f32 %v380, %v319
      %v383 = vadd.f32 %v381, %v327
      %v384 = vadd.f32 %v382, %v327
      %v385 = vmax.f32 %v383, 0.0
      %v386 = vmax.f32 %v384, 0.0
      %v387 = vpack.c.bf16 %v386, %v385
      %v389 = vunpack.c.l.b16 %v387
      %v390 = vunpack.c.h.b16 %v387
      %v391 = vpack.c.b16 %v389, %v389
      %v392 = vpack.c.b16 %v390, %v390
      %v394 = vshrl.u32 %v391, 16
      %v396 = vrot.slane %v394, 5
      %v397 = vshll.u32 %v391, 16
      %v399 = vrot.slane %v397, 6
      %v400 = vor.u32 %v396, %v399
      %v401 = vrot.slane %v400, 4
      %v403 = vshrl.u32 %v392, 16
      %v405 = vrot.slane %v403, 5
      %v406 = vshll.u32 %v392, 16
      %v408 = vrot.slane %v406, 6
      %v409 = vor.u32 %v405, %v408
      %v410 = vsel %vm341, %v401, %v409
      %v411 = vrot.slane %v409, 4
      %s415 = scalar_lea.vmem [#allocation2], 16
      %v416 = vld [vmem:[%s415] sm:$0xc]
      %v417 = vsel %vm366, %v400, %v416
      %418 = vst [vmem:[%s415] sm:$0xc] %v417
      %419 = vst.msk [vmem:[%s415 + $0x4] sm:$0xf] %vm293, %v410
      %v420 = vld [vmem:[%s415 + $0x8] sm:$0x7]
      %v421 = vsel %vm372, %v411, %v420
      %422 = vst [vmem:[%s415 + $0x8] sm:$0x7] %v421
      %s423 = scalar_lea.vmem %s280, 16
      %v424 = vld [vmem:[%s423] sm:$0xf]
      %v425 = vld [vmem:[%s423 + $0x4] sm:$0xf]
      %v426 = vunpack.c.l.bf16 %v424
      %v427 = vunpack.c.l.bf16 %v425
      %v428 = vmul.f32 %v426, %v319
      %v429 = vmul.f32 %v427, %v319
      %v430 = vadd.f32 %v428, %v327
      %v431 = vadd.f32 %v429, %v327
      %v432 = vmax.f32 %v430, 0.0
      %v433 = vmax.f32 %v431, 0.0
      %v434 = vpack.c.bf16 %v433, %v432
      %v436 = vunpack.c.l.b16 %v434
      %v437 = vunpack.c.h.b16 %v434
      %v438 = vpack.c.b16 %v436, %v436
      %v439 = vpack.c.b16 %v437, %v437
      %v441 = vshrl.u32 %v438, 16
      %v443 = vrot.slane %v441, 5
      %v444 = vshll.u32 %v438, 16
      %v446 = vrot.slane %v444, 6
      %v447 = vor.u32 %v443, %v446
      %v448 = vrot.slane %v447, 4
      %v450 = vshrl.u32 %v439, 16
      %v452 = vrot.slane %v450, 5
      %v453 = vshll.u32 %v439, 16
      %v455 = vrot.slane %v453, 6
      %v456 = vor.u32 %v452, %v455
      %v457 = vsel %vm341, %v448, %v456
      %v458 = vrot.slane %v456, 4
      %s462 = scalar_lea.vmem [#allocation2], 32
      %v463 = vld [vmem:[%s462] sm:$0xc]
      %v464 = vsel %vm366, %v447, %v463
      %465 = vst [vmem:[%s462] sm:$0xc] %v464
      %466 = vst.msk [vmem:[%s462 + $0x4] sm:$0xf] %vm293, %v457
      %v467 = vld [vmem:[%s462 + $0x8] sm:$0x7]
      %v468 = vsel %vm372, %v458, %v467
      %469 = vst [vmem:[%s462 + $0x8] sm:$0x7] %v468
      %s470 = scalar_lea.vmem %s280, 24
      %v471 = vld [vmem:[%s470] sm:$0xf]
      %v472 = vld [vmem:[%s470 + $0x4] sm:$0xf]
      %v473 = vunpack.c.l.bf16 %v471
      %v474 = vunpack.c.l.bf16 %v472
      %v475 = vmul.f32 %v473, %v319
      %v476 = vmul.f32 %v474, %v319
      %v477 = vadd.f32 %v475, %v327
      %v478 = vadd.f32 %v476, %v327
      %v479 = vmax.f32 %v477, 0.0
      %v480 = vmax.f32 %v478, 0.0
      %v481 = vpack.c.bf16 %v480, %v479
      %v483 = vunpack.c.l.b16 %v481
      %v484 = vunpack.c.h.b16 %v481
      %v485 = vpack.c.b16 %v483, %v483
      %v486 = vpack.c.b16 %v484, %v484
      %v488 = vshrl.u32 %v485, 16
      %v490 = vrot.slane %v488, 5
      %v491 = vshll.u32 %v485, 16
      %v493 = vrot.slane %v491, 6
      %v494 = vor.u32 %v490, %v493
      %v495 = vrot.slane %v494, 4
      %v497 = vshrl.u32 %v486, 16
      %v499 = vrot.slane %v497, 5
      %v500 = vshll.u32 %v486, 16
      %v502 = vrot.slane %v500, 6
      %v503 = vor.u32 %v499, %v502
      %v504 = vsel %vm341, %v495, %v503
      %v505 = vrot.slane %v503, 4
      %s509 = scalar_lea.vmem [#allocation2], 48
      %v510 = vld [vmem:[%s509] sm:$0xc]
      %v511 = vsel %vm366, %v494, %v510
      %512 = vst [vmem:[%s509] sm:$0xc] %v511
      %513 = vst.msk [vmem:[%s509 + $0x4] sm:$0xf] %vm293, %v504
      %v514 = vld [vmem:[%s509 + $0x8] sm:$0x7]
      %v515 = vsel %vm372, %v505, %v514
      %516 = vst [vmem:[%s509 + $0x8] sm:$0x7] %v515
      %v517 = vld [vmem:[%s509] sm:$0xf]
      %v518 = vld [vmem:[%s509 + $0x4] sm:$0xf]
      %v519 = vld [vmem:[%s4] sm:$0xf]
      %v520 = vld [vmem:[%s4 + $0x4] sm:$0xf]
      %522 = vset.pattern.permute.xlu0 0
      %523 = vperm.xlu0 %522, %v519
      %v524 = vpop.permute.xlu0 %523
      %v527 = vunpack.c.l.s4 839922192
      %v528 = vunpack.c.0.s8 %v527
      %v529 = vlaneseq
      %v530 = vshrl.u32 %v529, 7
      %v531 = vsub.s32 %v528, %v530
      %v532 = vrot.slane %v524, %v531
      %534 = vset.pattern.permute.xlu0 0
      %535 = vperm.xlu0 %534, %v520
      %v536 = vpop.permute.xlu0 %535
      %v539 = vunpack.c.l.s4 839922192
      %v540 = vunpack.c.0.s8 %v539
      %v541 = vlaneseq
      %v542 = vshrl.u32 %v541, 7
      %v543 = vsub.s32 %v540, %v542
      %v544 = vrot.slane %v536, %v543
      %v545 = vmul.bf16 %v517, %v532
      %v546 = vmul.bf16 %v518, %v544
      %v547 = vld [vmem:[%s3] sm:$0xf]
      %v548 = vld [vmem:[%s462] sm:$0xf]
      %v549 = vld [vmem:[%s462 + $0x4] sm:$0xf]
      %v550 = vld [vmem:[%s462 + $0x8] sm:$0x1]
      %s551 = scalar_lea.vmem %s3, 4
      %v552 = vld [vmem:[%s551] sm:$0xf]
      %v556 = vunpack.c.l.b16 %v548
      %v557 = vunpack.c.l.b16 %v549
      %v558 = vunpack.c.l.b16 %v550
      %v559 = vpack.c.b16 %v557, %v556
      %v560 = vpack.c.b16 %v558, %v558
      %vm561 = vsmask.f32 7424
      %v563 = vshrl.u32 %v559, 16
      %v565 = vshll.u32 %v559, 16
      %v567 = vrot.slane %v565, 1
      %v568 = vor.u32 %v563, %v567
      %v570 = vshll.u32 %v560, 16
      %v572 = vrot.slane %v570, 1
      %v573 = vsel %vm561, %v568, %v572
      %vm574 = vcmask 64512
      %v576 = vsel %vm574, %v573, 0
      %vm578 = vcmask 1043456
      %v580 = vsel %vm578, %v552, 0
      %582 = vmatprep.subr.bf16.mxu0 0
      %583 = vmatpush1.bf16.msra.mxu0 %v580
      %584 = vmatprep.subr.bf16.mxu0 0
      %585 = vmatpush1.bf16.msra.mxu0 0
      %586 = vmatprep.subr.bf16.mxu0 0
      %587 = vmatpush1.bf16.msra.mxu0 0
      %588 = vmatprep.subr.bf16.mxu0 0
      %589 = vmatpush1.bf16.msra.mxu0 0
      %590 = vmatprep.subr.bf16.mxu0 0
      %591 = vmatpush1.bf16.msra.mxu0 0
      %592 = vmatprep.subr.bf16.mxu0 0
      %593 = vmatpush1.bf16.msra.mxu0 0
      %594 = vmatprep.subr.bf16.mxu0 0
      %595 = vmatpush1.bf16.msra.mxu0 0
      %596 = vmatprep.subr.bf16.mxu0 0
      %597 = vmatpush1.bf16.msra.mxu0 0
      %598 = vmatprep.subr.bf16.mxu0 0
      %599 = vmatpush1.bf16.msra.mxu0 0
      %600 = vmatprep.subr.bf16.mxu0 0
      %601 = vmatpush1.bf16.msra.mxu0 0
      %602 = vmatprep.subr.bf16.mxu0 0
      %603 = vmatpush1.bf16.msra.mxu0 0
      %604 = vmatprep.subr.bf16.mxu0 0
      %605 = vmatpush1.bf16.msra.mxu0 0
      %606 = vmatprep.subr.bf16.mxu0 0
      %607 = vmatpush1.bf16.msra.mxu0 0
      %608 = vmatprep.subr.bf16.mxu0 0
      %609 = vmatpush1.bf16.msra.mxu0 0
      %610 = vmatprep.subr.bf16.mxu0 0
      %611 = vmatpush1.bf16.msra.mxu0 0
      %612 = vmatprep.subr.bf16.mxu0 0
      %613 = vmatpush1.bf16.msra.mxu0 0
      %614 = vmatprep.mubr.bf16.mxu0 0
      %615 = vmatmul.mubr.bf16.gmra.mrb[0].mxu0 %v576
      %v616 = vpop.f32.mrb[0].mxu0
      %v617 = vadd.f32 0.0, %v616
      %v618 = vpop.f32.mrb[0].mxu0
      %v619 = vpop.f32.mrb[0].mxu0
      %v620 = vadd.f32 0.0, %v619
      %v621 = vpop.f32.mrb[0].mxu0
      %622 = vdwg.mxu0
      %v625 = vunpack.c.l.b16 %v545
      %v626 = vunpack.c.l.b16 %v546
      %v627 = vpack.c.b16 %v626, %v625
      %v629 = vsel %vm574, %v627, 0
      %v632 = vsel %vm578, %v547, 0
      %634 = vmatprep.subr.bf16.mxu0 0
      %635 = vmatpush1.bf16.msra.mxu0 %v632
      %636 = vmatprep.subr.bf16.mxu0 0
      %637 = vmatpush1.bf16.msra.mxu0 0
      %638 = vmatprep.subr.bf16.mxu0 0
      %639 = vmatpush1.bf16.msra.mxu0 0
      %640 = vmatprep.subr.bf16.mxu0 0
      %641 = vmatpush1.bf16.msra.mxu0 0
      %642 = vmatprep.subr.bf16.mxu0 0
      %643 = vmatpush1.bf16.msra.mxu0 0
      %644 = vmatprep.subr.bf16.mxu0 0
      %645 = vmatpush1.bf16.msra.mxu0 0
      %646 = vmatprep.subr.bf16.mxu0 0
      %647 = vmatpush1.bf16.msra.mxu0 0
      %648 = vmatprep.subr.bf16.mxu0 0
      %649 = vmatpush1.bf16.msra.mxu0 0
      %650 = vmatprep.subr.bf16.mxu0 0
      %651 = vmatpush1.bf16.msra.mxu0 0
      %652 = vmatprep.subr.bf16.mxu0 0
      %653 = vmatpush1.bf16.msra.mxu0 0
      %654 = vmatprep.subr.bf16.mxu0 0
      %655 = vmatpush1.bf16.msra.mxu0 0
      %656 = vmatprep.subr.bf16.mxu0 0
      %657 = vmatpush1.bf16.msra.mxu0 0
      %658 = vmatprep.subr.bf16.mxu0 0
      %659 = vmatpush1.bf16.msra.mxu0 0
      %660 = vmatprep.subr.bf16.mxu0 0
      %661 = vmatpush1.bf16.msra.mxu0 0
      %662 = vmatprep.subr.bf16.mxu0 0
      %663 = vmatpush1.bf16.msra.mxu0 0
      %664 = vmatprep.subr.bf16.mxu0 0
      %665 = vmatpush1.bf16.msra.mxu0 0
      %666 = vmatprep.mubr.bf16.mxu0 0
      %667 = vmatmul.mubr.bf16.gmra.mrb[0].mxu0 %v629
      %v668 = vpop.f32.mrb[0].mxu0
      %v669 = vadd.f32 %v617, %v668
      %v670 = vpop.f32.mrb[0].mxu0
      %v671 = vpop.f32.mrb[0].mxu0
      %v672 = vadd.f32 %v620, %v671
      %v673 = vpop.f32.mrb[0].mxu0
      %674 = vdwg.mxu0
      %v675 = vld [vmem:[%s509] sm:$0xf]
      %v676 = vld [vmem:[%s509 + $0x4] sm:$0xf]
      %v677 = vld [vmem:[%s509 + $0x8] sm:$0x1]
      %s678 = scalar_lea.vmem %s3, 8
      %v679 = vld [vmem:[%s678] sm:$0xf]
      %v683 = vunpack.c.l.b16 %v675
      %v684 = vunpack.c.l.b16 %v676
      %v685 = vunpack.c.l.b16 %v677
      %v686 = vpack.c.b16 %v684, %v683
      %v687 = vpack.c.b16 %v685, %v685
      %v689 = vshrl.u32 %v686, 16
      %v691 = vshll.u32 %v686, 16
      %v693 = vrot.slane %v691, 1
      %v694 = vor.u32 %v689, %v693
      %v696 = vshll.u32 %v687, 16
      %v698 = vrot.slane %v696, 1
      %v699 = vsel %vm561, %v694, %v698
      %v701 = vsel %vm574, %v699, 0
      %v704 = vsel %vm578, %v679, 0
      %706 = vmatprep.subr.bf16.mxu0 0
      %707 = vmatpush1.bf16.msra.mxu0 %v704
      %708 = vmatprep.subr.bf16.mxu0 0
      %709 = vmatpush1.bf16.msra.mxu0 0
      %710 = vmatprep.subr.bf16.mxu0 0
      %711 = vmatpush1.bf16.msra.mxu0 0
      %712 = vmatprep.subr.bf16.mxu0 0
      %713 = vmatpush1.bf16.msra.mxu0 0
      %714 = vmatprep.subr.bf16.mxu0 0
      %715 = vmatpush1.bf16.msra.mxu0 0
      %716 = vmatprep.subr.bf16.mxu0 0
      %717 = vmatpush1.bf16.msra.mxu0 0
      %718 = vmatprep.subr.bf16.mxu0 0
      %719 = vmatpush1.bf16.msra.mxu0 0
      %720 = vmatprep.subr.bf16.mxu0 0
      %721 = vmatpush1.bf16.msra.mxu0 0
      %722 = vmatprep.subr.bf16.mxu0 0
      %723 = vmatpush1.bf16.msra.mxu0 0
      %724 = vmatprep.subr.bf16.mxu0 0
      %725 = vmatpush1.bf16.msra.mxu0 0
      %726 = vmatprep.subr.bf16.mxu0 0
      %727 = vmatpush1.bf16.msra.mxu0 0
      %728 = vmatprep.subr.bf16.mxu0 0
      %729 = vmatpush1.bf16.msra.mxu0 0
      %730 = vmatprep.subr.bf16.mxu0 0
      %731 = vmatpush1.bf16.msra.mxu0 0
      %732 = vmatprep.subr.bf16.mxu0 0
      %733 = vmatpush1.bf16.msra.mxu0 0
      %734 = vmatprep.subr.bf16.mxu0 0
      %735 = vmatpush1.bf16.msra.mxu0 0
      %736 = vmatprep.subr.bf16.mxu0 0
      %737 = vmatpush1.bf16.msra.mxu0 0
      %738 = vmatprep.mubr.bf16.mxu0 0
      %739 = vmatmul.mubr.bf16.gmra.mrb[0].mxu0 %v701
      %v740 = vpop.f32.mrb[0].mxu0
      %v741 = vadd.f32 0.0, %v740
      %v742 = vpop.f32.mrb[0].mxu0
      %v743 = vpop.f32.mrb[0].mxu0
      %v744 = vadd.f32 0.0, %v743
      %v745 = vpop.f32.mrb[0].mxu0
      %746 = vdwg.mxu0
      %v747 = vadd.f32 %v669, %v741
      %v748 = vadd.f32 %v672, %v744
      %v749 = vld [vmem:[%s415] sm:$0xc]
      %v750 = vld [vmem:[%s415 + $0x4] sm:$0xf]
      %v751 = vld [vmem:[%s415 + $0x8] sm:$0x3]
      %vm754 = vcmask 1041408
      %vm755 = vcmask 1045508
      %vm756 = vmor %vm754, %vm755
      %v757 = vrot.slane %v532, 6
      %v758 = vrot.slane %v757, 4
      %v759 = vrot.slane %v544, 6
      %v760 = vsel %vm756, %v758, %v759
      %v761 = vrot.slane %v759, 4
      %v765 = vmul.bf16 %v749, %v757
      %v766 = vmul.bf16 %v750, %v760
      %v767 = vmul.bf16 %v751, %v761
      %s768 = scalar_lea.vmem %s3, 12
      %v769 = vld [vmem:[%s768] sm:$0xf]
      %v773 = vunpack.c.l.b16 %v765
      %v774 = vunpack.c.l.b16 %v766
      %v775 = vunpack.c.l.b16 %v767
      %v776 = vpack.c.b16 %v774, %v773
      %v777 = vpack.c.b16 %v775, %v775
      %vm778 = vcmask 1045504
      %v779 = vrot.slane %v776, 2
      %v780 = vrot.slane %v777, 2
      %v781 = vsel %vm778, %v779, %v780
      %v783 = vsel %vm574, %v781, 0
      %v786 = vsel %vm578, %v769, 0
      %788 = vmatprep.subr.bf16.mxu0 0
      %789 = vmatpush1.bf16.msra.mxu0 %v786
      %790 = vmatprep.subr.bf16.mxu0 0
      %791 = vmatpush1.bf16.msra.mxu0 0
      %792 = vmatprep.subr.bf16.mxu0 0
      %793 = vmatpush1.bf16.msra.mxu0 0
      %794 = vmatprep.subr.bf16.mxu0 0
      %795 = vmatpush1.bf16.msra.mxu0 0
      %796 = vmatprep.subr.bf16.mxu0 0
      %797 = vmatpush1.bf16.msra.mxu0 0
      %798 = vmatprep.subr.bf16.mxu0 0
      %799 = vmatpush1.bf16.msra.mxu0 0
      %800 = vmatprep.subr.bf16.mxu0 0
      %801 = vmatpush1.bf16.msra.mxu0 0
      %802 = vmatprep.subr.bf16.mxu0 0
      %803 = vmatpush1.bf16.msra.mxu0 0
      %804 = vmatprep.subr.bf16.mxu0 0
      %805 = vmatpush1.bf16.msra.mxu0 0
      %806 = vmatprep.subr.bf16.mxu0 0
      %807 = vmatpush1.bf16.msra.mxu0 0
      %808 = vmatprep.subr.bf16.mxu0 0
      %809 = vmatpush1.bf16.msra.mxu0 0
      %810 = vmatprep.subr.bf16.mxu0 0
      %811 = vmatpush1.bf16.msra.mxu0 0
      %812 = vmatprep.subr.bf16.mxu0 0
      %813 = vmatpush1.bf16.msra.mxu0 0
      %814 = vmatprep.subr.bf16.mxu0 0
      %815 = vmatpush1.bf16.msra.mxu0 0
      %816 = vmatprep.subr.bf16.mxu0 0
      %817 = vmatpush1.bf16.msra.mxu0 0
      %818 = vmatprep.subr.bf16.mxu0 0
      %819 = vmatpush1.bf16.msra.mxu0 0
      %820 = vmatprep.mubr.bf16.mxu0 0
      %821 = vmatmul.mubr.bf16.gmra.mrb[0].mxu0 %v783
      %v822 = vpop.f32.mrb[0].mxu0
      %v823 = vadd.f32 0.0, %v822
      %v824 = vpop.f32.mrb[0].mxu0
      %v825 = vpop.f32.mrb[0].mxu0
      %v826 = vadd.f32 0.0, %v825
      %v827 = vpop.f32.mrb[0].mxu0
      %828 = vdwg.mxu0
      %v829 = vadd.f32 %v747, %v823
      %v830 = vadd.f32 %v748, %v826
      %v831 = vld [vmem:[#allocation2] sm:$0xc]
      %v832 = vld [vmem:[#allocation2 + $0x4] sm:$0xf]
      %v833 = vld [vmem:[#allocation2 + $0x8] sm:$0x7]
      %s834 = scalar_lea.vmem %s3, 16
      %v835 = vld [vmem:[%s834] sm:$0xf]
      %v839 = vunpack.c.l.b16 %v831
      %v840 = vunpack.c.l.b16 %v832
      %v841 = vunpack.c.l.b16 %v833
      %v842 = vpack.c.b16 %v840, %v839
      %v843 = vpack.c.b16 %v841, %v841
      %vm844 = vsmask.f32 5376
      %v846 = vshrl.u32 %v842, 16
      %v848 = vrot.slane %v846, 2
      %v849 = vshll.u32 %v842, 16
      %v851 = vrot.slane %v849, 3
      %v852 = vor.u32 %v848, %v851
      %v854 = vshrl.u32 %v843, 16
      %v856 = vrot.slane %v854, 2
      %v857 = vshll.u32 %v843, 16
      %v859 = vrot.slane %v857, 3
      %v860 = vor.u32 %v856, %v859
      %v861 = vsel %vm844, %v852, %v860
      %v863 = vsel %vm574, %v861, 0
      %v866 = vsel %vm578, %v835, 0
      %868 = vmatprep.subr.bf16.mxu0 0
      %869 = vmatpush1.bf16.msra.mxu0 %v866
      %870 = vmatprep.subr.bf16.mxu0 0
      %871 = vmatpush1.bf16.msra.mxu0 0
      %872 = vmatprep.subr.bf16.mxu0 0
      %873 = vmatpush1.bf16.msra.mxu0 0
      %874 = vmatprep.subr.bf16.mxu0 0
      %875 = vmatpush1.bf16.msra.mxu0 0
      %876 = vmatprep.subr.bf16.mxu0 0
      %877 = vmatpush1.bf16.msra.mxu0 0
      %878 = vmatprep.subr.bf16.mxu0 0
      %879 = vmatpush1.bf16.msra.mxu0 0
      %880 = vmatprep.subr.bf16.mxu0 0
      %881 = vmatpush1.bf16.msra.mxu0 0
      %882 = vmatprep.subr.bf16.mxu0 0
      %883 = vmatpush1.bf16.msra.mxu0 0
      %884 = vmatprep.subr.bf16.mxu0 0
      %885 = vmatpush1.bf16.msra.mxu0 0
      %886 = vmatprep.subr.bf16.mxu0 0
      %887 = vmatpush1.bf16.msra.mxu0 0
      %888 = vmatprep.subr.bf16.mxu0 0
      %889 = vmatpush1.bf16.msra.mxu0 0
      %890 = vmatprep.subr.bf16.mxu0 0
      %891 = vmatpush1.bf16.msra.mxu0 0
      %892 = vmatprep.subr.bf16.mxu0 0
      %893 = vmatpush1.bf16.msra.mxu0 0
      %894 = vmatprep.subr.bf16.mxu0 0
      %895 = vmatpush1.bf16.msra.mxu0 0
      %896 = vmatprep.subr.bf16.mxu0 0
      %897 = vmatpush1.bf16.msra.mxu0 0
      %898 = vmatprep.subr.bf16.mxu0 0
      %899 = vmatpush1.bf16.msra.mxu0 0
      %900 = vmatprep.mubr.bf16.mxu0 0
      %901 = vmatmul.mubr.bf16.gmra.mrb[0].mxu0 %v863
      %v902 = vpop.f32.mrb[0].mxu0
      %v903 = vadd.f32 0.0, %v902
      %v904 = vpop.f32.mrb[0].mxu0
      %v905 = vpop.f32.mrb[0].mxu0
      %v906 = vadd.f32 0.0, %v905
      %v907 = vpop.f32.mrb[0].mxu0
      %908 = vdwg.mxu0
      %v909 = vadd.f32 %v829, %v903
      %v910 = vadd.f32 %v830, %v906
      %v911 = vld [vmem:[%s415 + $0x8] sm:$0x7]
      %s912 = scalar_lea.vmem %s3, 20
      %v913 = vld [vmem:[%s912] sm:$0xf]
      %v917 = vunpack.c.l.b16 %v749
      %v918 = vunpack.c.l.b16 %v750
      %v919 = vunpack.c.l.b16 %v911
      %v920 = vpack.c.b16 %v918, %v917
      %v921 = vpack.c.b16 %v919, %v919
      %v923 = vshrl.u32 %v920, 16
      %v925 = vrot.slane %v923, 2
      %v926 = vshll.u32 %v920, 16
      %v928 = vrot.slane %v926, 3
      %v929 = vor.u32 %v925, %v928
      %v931 = vshrl.u32 %v921, 16
      %v933 = vrot.slane %v931, 2
      %v934 = vshll.u32 %v921, 16
      %v936 = vrot.slane %v934, 3
      %v937 = vor.u32 %v933, %v936
      %v938 = vsel %vm844, %v929, %v937
      %v940 = vsel %vm574, %v938, 0
      %v943 = vsel %vm578, %v913, 0
      %945 = vmatprep.subr.bf16.mxu0 0
      %946 = vmatpush1.bf16.msra.mxu0 %v943
      %947 = vmatprep.subr.bf16.mxu0 0
      %948 = vmatpush1.bf16.msra.mxu0 0
      %949 = vmatprep.subr.bf16.mxu0 0
      %950 = vmatpush1.bf16.msra.mxu0 0
      %951 = vmatprep.subr.bf16.mxu0 0
      %952 = vmatpush1.bf16.msra.mxu0 0
      %953 = vmatprep.subr.bf16.mxu0 0
      %954 = vmatpush1.bf16.msra.mxu0 0
      %955 = vmatprep.subr.bf16.mxu0 0
      %956 = vmatpush1.bf16.msra.mxu0 0
      %957 = vmatprep.subr.bf16.mxu0 0
      %958 = vmatpush1.bf16.msra.mxu0 0
      %959 = vmatprep.subr.bf16.mxu0 0
      %960 = vmatpush1.bf16.msra.mxu0 0
      %961 = vmatprep.subr.bf16.mxu0 0
      %962 = vmatpush1.bf16.msra.mxu0 0
      %963 = vmatprep.subr.bf16.mxu0 0
      %964 = vmatpush1.bf16.msra.mxu0 0
      %965 = vmatprep.subr.bf16.mxu0 0
      %966 = vmatpush1.bf16.msra.mxu0 0
      %967 = vmatprep.subr.bf16.mxu0 0
      %968 = vmatpush1.bf16.msra.mxu0 0
      %969 = vmatprep.subr.bf16.mxu0 0
      %970 = vmatpush1.bf16.msra.mxu0 0
      %971 = vmatprep.subr.bf16.mxu0 0
      %972 = vmatpush1.bf16.msra.mxu0 0
      %973 = vmatprep.subr.bf16.mxu0 0
      %974 = vmatpush1.bf16.msra.mxu0 0
      %975 = vmatprep.subr.bf16.mxu0 0
      %976 = vmatpush1.bf16.msra.mxu0 0
      %977 = vmatprep.mubr.bf16.mxu0 0
      %978 = vmatmul.mubr.bf16.gmra.mrb[0].mxu0 %v940
      %v979 = vpop.f32.mrb[0].mxu0
      %v980 = vadd.f32 0.0, %v979
      %v981 = vpop.f32.mrb[0].mxu0
      %v982 = vpop.f32.mrb[0].mxu0
      %v983 = vadd.f32 0.0, %v982
      %v984 = vpop.f32.mrb[0].mxu0
      %985 = vdwg.mxu0
      %v986 = vadd.f32 %v909, %v980
      %v987 = vadd.f32 %v910, %v983
      %v988 = vld [vmem:[%s509] sm:$0xc]
      %v989 = vld [vmem:[%s509 + $0x8] sm:$0x3]
      %v990 = vmul.bf16 %v988, %v757
      %v991 = vmul.bf16 %v676, %v760
      %v992 = vmul.bf16 %v989, %v761
      %s993 = scalar_lea.vmem %s3, 24
      %v994 = vld [vmem:[%s993] sm:$0xf]
      %v998 = vunpack.c.l.b16 %v990
      %v999 = vunpack.c.l.b16 %v991
      %v1000 = vunpack.c.l.b16 %v992
      %v1001 = vpack.c.b16 %v999, %v998
      %v1002 = vpack.c.b16 %v1000, %v1000
      %v1003 = vrot.slane %v1001, 2
      %v1004 = vrot.slane %v1002, 2
      %v1005 = vsel %vm778, %v1003, %v1004
      %v1007 = vsel %vm574, %v1005, 0
      %v1010 = vsel %vm578, %v994, 0
      %1012 = vmatprep.subr.bf16.mxu0 0
      %1013 = vmatpush1.bf16.msra.mxu0 %v1010
      %1014 = vmatprep.subr.bf16.mxu0 0
      %1015 = vmatpush1.bf16.msra.mxu0 0
      %1016 = vmatprep.subr.bf16.mxu0 0
      %1017 = vmatpush1.bf16.msra.mxu0 0
      %1018 = vmatprep.subr.bf16.mxu0 0
      %1019 = vmatpush1.bf16.msra.mxu0 0
      %1020 = vmatprep.subr.bf16.mxu0 0
      %1021 = vmatpush1.bf16.msra.mxu0 0
      %1022 = vmatprep.subr.bf16.mxu0 0
      %1023 = vmatpush1.bf16.msra.mxu0 0
      %1024 = vmatprep.subr.bf16.mxu0 0
      %1025 = vmatpush1.bf16.msra.mxu0 0
      %1026 = vmatprep.subr.bf16.mxu0 0
      %1027 = vmatpush1.bf16.msra.mxu0 0
      %1028 = vmatprep.subr.bf16.mxu0 0
      %1029 = vmatpush1.bf16.msra.mxu0 0
      %1030 = vmatprep.subr.bf16.mxu0 0
      %1031 = vmatpush1.bf16.msra.mxu0 0
      %1032 = vmatprep.subr.bf16.mxu0 0
      %1033 = vmatpush1.bf16.msra.mxu0 0
      %1034 = vmatprep.subr.bf16.mxu0 0
      %1035 = vmatpush1.bf16.msra.mxu0 0
      %1036 = vmatprep.subr.bf16.mxu0 0
      %1037 = vmatpush1.bf16.msra.mxu0 0
      %1038 = vmatprep.subr.bf16.mxu0 0
      %1039 = vmatpush1.bf16.msra.mxu0 0
      %1040 = vmatprep.subr.bf16.mxu0 0
      %1041 = vmatpush1.bf16.msra.mxu0 0
      %1042 = vmatprep.subr.bf16.mxu0 0
      %1043 = vmatpush1.bf16.msra.mxu0 0
      %1044 = vmatprep.mubr.bf16.mxu0 0
      %1045 = vmatmul.mubr.bf16.gmra.mrb[0].mxu0 %v1007
      %v1046 = vpop.f32.mrb[0].mxu0
      %v1047 = vadd.f32 0.0, %v1046
      %v1048 = vpop.f32.mrb[0].mxu0
      %v1049 = vpop.f32.mrb[0].mxu0
      %v1050 = vadd.f32 0.0, %v1049
      %v1051 = vpop.f32.mrb[0].mxu0
      %1052 = vdwg.mxu0
      %v1053 = vadd.f32 %v986, %v1047
      %v1054 = vadd.f32 %v987, %v1050
      %v1055 = vld [vmem:[%s462] sm:$0xc]
      %v1056 = vld [vmem:[%s462 + $0x8] sm:$0x7]
      %s1057 = scalar_lea.vmem %s3, 28
      %v1058 = vld [vmem:[%s1057] sm:$0xf]
      %v1061 = vunpack.c.l.b16 %v1055
      %v1062 = vunpack.c.l.b16 %v1056
      %v1063 = vpack.c.b16 %v557, %v1061
      %v1064 = vpack.c.b16 %v1062, %v1062
      %v1066 = vshrl.u32 %v1063, 16
      %v1068 = vrot.slane %v1066, 2
      %v1069 = vshll.u32 %v1063, 16
      %v1071 = vrot.slane %v1069, 3
      %v1072 = vor.u32 %v1068, %v1071
      %v1074 = vshrl.u32 %v1064, 16
      %v1076 = vrot.slane %v1074, 2
      %v1077 = vshll.u32 %v1064, 16
      %v1079 = vrot.slane %v1077, 3
      %v1080 = vor.u32 %v1076, %v1079
      %v1081 = vsel %vm844, %v1072, %v1080
      %v1083 = vsel %vm574, %v1081, 0
      %v1086 = vsel %vm578, %v1058, 0
      %1088 = vmatprep.subr.bf16.mxu0 0
      %1089 = vmatpush1.bf16.msra.mxu0 %v1086
      %1090 = vmatprep.subr.bf16.mxu0 0
      %1091 = vmatpush1.bf16.msra.mxu0 0
      %1092 = vmatprep.subr.bf16.mxu0 0
      %1093 = vmatpush1.bf16.msra.mxu0 0
      %1094 = vmatprep.subr.bf16.mxu0 0
      %1095 = vmatpush1.bf16.msra.mxu0 0
      %1096 = vmatprep.subr.bf16.mxu0 0
      %1097 = vmatpush1.bf16.msra.mxu0 0
      %1098 = vmatprep.subr.bf16.mxu0 0
      %1099 = vmatpush1.bf16.msra.mxu0 0
      %1100 = vmatprep.subr.bf16.mxu0 0
      %1101 = vmatpush1.bf16.msra.mxu0 0
      %1102 = vmatprep.subr.bf16.mxu0 0
      %1103 = vmatpush1.bf16.msra.mxu0 0
      %1104 = vmatprep.subr.bf16.mxu0 0
      %1105 = vmatpush1.bf16.msra.mxu0 0
      %1106 = vmatprep.subr.bf16.mxu0 0
      %1107 = vmatpush1.bf16.msra.mxu0 0
      %1108 = vmatprep.subr.bf16.mxu0 0
      %1109 = vmatpush1.bf16.msra.mxu0 0
      %1110 = vmatprep.subr.bf16.mxu0 0
      %1111 = vmatpush1.bf16.msra.mxu0 0
      %1112 = vmatprep.subr.bf16.mxu0 0
      %1113 = vmatpush1.bf16.msra.mxu0 0
      %1114 = vmatprep.subr.bf16.mxu0 0
      %1115 = vmatpush1.bf16.msra.mxu0 0
      %1116 = vmatprep.subr.bf16.mxu0 0
      %1117 = vmatpush1.bf16.msra.mxu0 0
      %1118 = vmatprep.subr.bf16.mxu0 0
      %1119 = vmatpush1.bf16.msra.mxu0 0
      %1120 = vmatprep.mubr.bf16.mxu0 0
      %1121 = vmatmul.mubr.bf16.gmra.mrb[0].mxu0 %v1083
      %v1122 = vpop.f32.mrb[0].mxu0
      %v1123 = vadd.f32 0.0, %v1122
      %v1124 = vpop.f32.mrb[0].mxu0
      %v1125 = vpop.f32.mrb[0].mxu0
      %v1126 = vadd.f32 0.0, %v1125
      %v1127 = vpop.f32.mrb[0].mxu0
      %1128 = vdwg.mxu0
      %v1129 = vadd.f32 %v1053, %v1123
      %v1130 = vadd.f32 %v1054, %v1126
      %v1131 = vld [vmem:[%s509 + $0x8] sm:$0x7]
      %s1132 = scalar_lea.vmem %s3, 32
      %v1133 = vld [vmem:[%s1132] sm:$0xf]
      %v1136 = vunpack.c.l.b16 %v988
      %v1137 = vunpack.c.l.b16 %v1131
      %v1138 = vpack.c.b16 %v684, %v1136
      %v1139 = vpack.c.b16 %v1137, %v1137
      %v1141 = vshrl.u32 %v1138, 16
      %v1143 = vrot.slane %v1141, 2
      %v1144 = vshll.u32 %v1138, 16
      %v1146 = vrot.slane %v1144, 3
      %v1147 = vor.u32 %v1143, %v1146
      %v1149 = vshrl.u32 %v1139, 16
      %v1151 = vrot.slane %v1149, 2
      %v1152 = vshll.u32 %v1139, 16
      %v1154 = vrot.slane %v1152, 3
      %v1155 = vor.u32 %v1151, %v1154
      %v1156 = vsel %vm844, %v1147, %v1155
      %v1158 = vsel %vm574, %v1156, 0
      %v1161 = vsel %vm578, %v1133, 0
      %1163 = vmatprep.subr.bf16.mxu0 0
      %1164 = vmatpush1.bf16.msra.mxu0 %v1161
      %1165 = vmatprep.subr.bf16.mxu0 0
      %1166 = vmatpush1.bf16.msra.mxu0 0
      %1167 = vmatprep.subr.bf16.mxu0 0
      %1168 = vmatpush1.bf16.msra.mxu0 0
      %1169 = vmatprep.subr.bf16.mxu0 0
      %1170 = vmatpush1.bf16.msra.mxu0 0
      %1171 = vmatprep.subr.bf16.mxu0 0
      %1172 = vmatpush1.bf16.msra.mxu0 0
      %1173 = vmatprep.subr.bf16.mxu0 0
      %1174 = vmatpush1.bf16.msra.mxu0 0
      %1175 = vmatprep.subr.bf16.mxu0 0
      %1176 = vmatpush1.bf16.msra.mxu0 0
      %1177 = vmatprep.subr.bf16.mxu0 0
      %1178 = vmatpush1.bf16.msra.mxu0 0
      %1179 = vmatprep.subr.bf16.mxu0 0
      %1180 = vmatpush1.bf16.msra.mxu0 0
      %1181 = vmatprep.subr.bf16.mxu0 0
      %1182 = vmatpush1.bf16.msra.mxu0 0
      %1183 = vmatprep.subr.bf16.mxu0 0
      %1184 = vmatpush1.bf16.msra.mxu0 0
      %1185 = vmatprep.subr.bf16.mxu0 0
      %1186 = vmatpush1.bf16.msra.mxu0 0
      %1187 = vmatprep.subr.bf16.mxu0 0
      %1188 = vmatpush1.bf16.msra.mxu0 0
      %1189 = vmatprep.subr.bf16.mxu0 0
      %1190 = vmatpush1.bf16.msra.mxu0 0
      %1191 = vmatprep.subr.bf16.mxu0 0
      %1192 = vmatpush1.bf16.msra.mxu0 0
      %1193 = vmatprep.subr.bf16.mxu0 0
      %1194 = vmatpush1.bf16.msra.mxu0 0
      %1195 = vmatprep.mubr.bf16.mxu0 0
      %1196 = vmatmul.mubr.bf16.gmra.mrb[0].mxu0 %v1158
      %v1197 = vpop.f32.mrb[0].mxu0
      %v1198 = vadd.f32 0.0, %v1197
      %v1199 = vpop.f32.mrb[0].mxu0
      %v1200 = vpop.f32.mrb[0].mxu0
      %v1201 = vadd.f32 0.0, %v1200
      %v1202 = vpop.f32.mrb[0].mxu0
      %1203 = vdwg.mxu0
      %v1204 = vadd.f32 %v1129, %v1198
      %v1205 = vadd.f32 %v1130, %v1201
      %v1206 = vpack.c.bf16 %v1205, %v1204
      %v1208 = vunpack.c.l.b16 %v1206
      %v1209 = vunpack.c.h.b16 %v1206
      %v1210 = vpack.c.b16 %v1208, %v1208
      %v1211 = vpack.c.b16 %v1209, %v1209
      %1214 = vst.msk [vmem:[%s285] sm:$0xf] %vm293, %v1210
      %1215 = vst.msk [vmem:[%s285 + $0x4] sm:$0xf] %vm293, %v1211
      %v1216 = vsel %vm574, %v1204, 0.0
      %v1217 = vsel %vm574, %v1205, 0.0
      %v1218 = vadd.f32 %v1216, %v1217
      %v1219 = vrot.slane %v1218, 4
      %v1220 = vadd.f32 %v1218, %v1219
      %v1221 = vrot.slane %v1220, 2
      %v1222 = vadd.f32 %v1220, %v1221
      %v1223 = vrot.slane %v1222, 1
      %v1224 = vadd.f32 %v1222, %v1223
      %1225 = vst.msk [vmem:[%s289] sm:$0x1] %vm297, %v1224
      %v1226 = vmul.f32 %v1204, %v1204
      %v1227 = vmul.f32 %v1205, %v1205
      %v1228 = vsel %vm574, %v1226, 0.0
      %v1229 = vsel %vm574, %v1227, 0.0
      %v1230 = vadd.f32 %v1228, %v1229
      %v1231 = vrot.slane %v1230, 4
      %v1232 = vadd.f32 %v1230, %v1231
      %v1233 = vrot.slane %v1232, 2
      %v1234 = vadd.f32 %v1232, %v1233
      %v1235 = vrot.slane %v1234, 1
      %v1236 = vadd.f32 %v1234, %v1235
      %1237 = vst.msk [vmem:[%s289 + $0x1] sm:$0x1] %vm297, %v1236
      %p1238 = scmp.lt.s32.totalorder %s19, 1
      %s1239 = scalar_select %p1238, %s19, 1
      %s1240 = smul.addr %s1239, 2
      %s1241 = smul.addr %s1240, 4
      %s1242 = scalar_lea.vmem %s6, %s1241
      %p1243 = scmp.lt.s32.totalorder %s19, 1
      %s1244 = scalar_select %p1243, %s19, 1
      %s1245 = smul.addr %s1244, 2
      %s1246 = scalar_lea.vmem %s7, %s1245
      // Predicated region
      $region45: #{block_forward.6} parent=43 // pred_check
        %p1247 = pneg %p168
      $region46: #{block_forward.6} parent=43 // pred_check_branch
        %1249 = sbr.rel (%p1247) target = $region48
      $region47: #{block_forward.6} parent=43 // pred_region
        _
      $region48: #{block_forward.6} parent=43 // pred_fallthru
        _
      // Predicated region
      $region49: #{block_forward.6} parent=43 // pred_check
        %p1250 = pneg %p194
      $region50: #{block_forward.6} parent=43 // pred_check_branch
        %1252 = sbr.rel (%p1250) target = $region52
      $region51: #{block_forward.6} parent=43 // pred_region
        _
      $region52: #{block_forward.6} parent=43 // pred_fallthru
        _
    $region44: #{block_forward.6} parent=5 // pred_fallthru
      _
    %p1253 = scmp.le.s32.totalorder 2, %s14
    // Predicated region
    $region53: #{block_forward.6} parent=5 // pred_check
      %p1254 = pneg %p1253
    $region54: #{block_forward.6} parent=5 // pred_check_branch
      %1256 = sbr.rel (%p1254) target = $region56
    $region55: #{block_forward.6} parent=5 // pred_region
      %s1257 = ssub.s32 %s14, 2
      // Predicated region
      $region57: #{block_forward.6} parent=55 // pred_check
        %p1258 = pneg %p174
      $region58: #{block_forward.6} parent=55 // pred_check_branch
        %1260 = sbr.rel (%p1258) target = $region60
      $region59: #{block_forward.6} parent=55 // pred_region
        %p1261 = scmp.lt.s32.totalorder %s20, 1
        %s1262 = scalar_select %p1261, %s20, 1
        %s1263 = smul.addr %s1262, 2
        %s1264 = smul.addr %s1263, 4
        %s1265 = scalar_lea.vmem %s6, %s1264
      $region60: #{block_forward.6} parent=55 // pred_fallthru
        _
      // Predicated region
      $region61: #{block_forward.6} parent=55 // pred_check
        %p1266 = pneg %p200
      $region62: #{block_forward.6} parent=55 // pred_check_branch
        %1268 = sbr.rel (%p1266) target = $region64
      $region63: #{block_forward.6} parent=55 // pred_region
        %p1269 = scmp.lt.s32.totalorder %s20, 1
        %s1270 = scalar_select %p1269, %s20, 1
        %s1271 = smul.addr %s1270, 2
        %s1272 = scalar_lea.vmem %s7, %s1271
      $region64: #{block_forward.6} parent=55 // pred_fallthru
        _
    $region56: #{block_forward.6} parent=5 // pred_fallthru
      _
  $region6: #{block_forward.6} parent=0 // loop_footer
    %s18 = sadd.s32 1, %s14
  $region7: #{block_forward.6} parent=0 // loop_footer_branch
    %13 = sbr.rel target = $region3
  $region8: #{block_forward.6} parent=0 // loop_exit
    _

// kernel: block_forward.9
$region0: #{block_forward.9}
  #allocation0 [shape = 'u32[]', space=smem, size = 0x4, offset = 0x4, fixed_abs, tag = 'smem constant byte address 0x4 - core index']
  #allocation1 [shape = 'u32[144,128]{1,0:T(1,128)}', space=vmem, size = 0x12000, scoped, tag = 'internal scratch']
  %s0 = inlined_call_operand.vmem [shape: f32[32,32], index: 0, kind: input, shape index: {}]
  %s1 = inlined_call_operand.vmem [shape: f32[1,32], index: 1, kind: input, shape index: {}]
  %s2 = inlined_call_operand.vmem [shape: f32[1,32], index: 2, kind: input, shape index: {}]
  %s3 = inlined_call_operand.vmem [shape: f32[32,32], index: 3, kind: input, shape index: {}]
  %s4 = inlined_call_operand.vmem [shape: f32[1,32], index: 4, kind: input, shape index: {}]
  %s5 = inlined_call_operand.vmem [shape: f32[1,32], index: 5, kind: input, shape index: {}]
  %s6 = inlined_call_operand.hbm [shape: f32[32,32], index: 6, kind: output, shape index: {}]
  %s7 = sld [smem:[#allocation0]]
  $region34: #{block_forward.9} parent=0
    _
  %s9 = ssub.s32 1, %s7
  %s10 = scalar_select 0, %s9, %s7
  $region1: #{block_forward.9} parent=0
    #allocation2 [shape = 'u8[16384]{0}', space=vmem, size = 0x4000, scoped, tag = 'output window, operand 0, single buffered']
    #allocation3 [shape = 's32[1]{0}', space=sflag, size = 0x4, scoped, tag = 'scoped memory for block_forward.9']
    %11 = vsyncpa [#allocation3], 0
    // Predicated region
    $region2: #{block_forward.9} parent=1 // pred_check
      _
    $region3: #{block_forward.9} parent=1 // pred_check_branch
      %13 = sbr.rel (0) target = $region5
    $region4: #{block_forward.9} parent=1 // pred_region
      _
    $region5: #{block_forward.9} parent=1 // pred_fallthru
      _
    // Predicated region
    $region6: #{block_forward.9} parent=1 // pred_check
      _
    $region7: #{block_forward.9} parent=1 // pred_check_branch
      %15 = sbr.rel (0) target = $region9
    $region8: #{block_forward.9} parent=1 // pred_region
      _
    $region9: #{block_forward.9} parent=1 // pred_fallthru
      _
    // Predicated region
    $region10: #{block_forward.9} parent=1 // pred_check
      _
    $region11: #{block_forward.9} parent=1 // pred_check_branch
      %17 = sbr.rel (0) target = $region13
    $region12: #{block_forward.9} parent=1 // pred_region
      _
    $region13: #{block_forward.9} parent=1 // pred_fallthru
      _
    // Predicated region
    $region14: #{block_forward.9} parent=1 // pred_check
      _
    $region15: #{block_forward.9} parent=1 // pred_check_branch
      %19 = sbr.rel (0) target = $region17
    $region16: #{block_forward.9} parent=1 // pred_region
      _
    $region17: #{block_forward.9} parent=1 // pred_fallthru
      _
    // Predicated region
    $region18: #{block_forward.9} parent=1 // pred_check
      _
    $region19: #{block_forward.9} parent=1 // pred_check_branch
      %21 = sbr.rel (0) target = $region21
    $region20: #{block_forward.9} parent=1 // pred_region
      _
    $region21: #{block_forward.9} parent=1 // pred_fallthru
      _
    // Predicated region
    $region22: #{block_forward.9} parent=1 // pred_check
      _
    $region23: #{block_forward.9} parent=1 // pred_check_branch
      %23 = sbr.rel (0) target = $region25
    $region24: #{block_forward.9} parent=1 // pred_region
      _
    $region25: #{block_forward.9} parent=1 // pred_fallthru
      _
    %v24 = vld [vmem:[%s0] sm:$0xff]
    %v25 = vld [vmem:[%s0 + $0x8] sm:$0xff]
    %v26 = vld [vmem:[%s0 + $0x10] sm:$0xff]
    %v27 = vld [vmem:[%s0 + $0x18] sm:$0xff]
    %v28 = vld [vmem:[%s1] sm:$0x1]
    %v30 = vlaneseq
    %v31 = vshrl.u32 %v30, 7
    %v32 = vsub.s32 0, %v31
    %v33 = vrot.slane %v28, %v32
    %v35 = vmul.f32 %v24, %v33
    %v36 = vmul.f32 %v25, %v33
    %v37 = vmul.f32 %v26, %v33
    %v38 = vmul.f32 %v27, %v33
    %v39 = vld [vmem:[%s2] sm:$0x1]
    %v41 = vlaneseq
    %v42 = vshrl.u32 %v41, 7
    %v43 = vsub.s32 0, %v42
    %v44 = vrot.slane %v39, %v43
    %v46 = vadd.f32 %v35, %v44
    %v47 = vadd.f32 %v36, %v44
    %v48 = vadd.f32 %v37, %v44
    %v49 = vadd.f32 %v38, %v44
    %v50 = vld [vmem:[%s3] sm:$0xff]
    %v51 = vld [vmem:[%s3 + $0x8] sm:$0xff]
    %v52 = vld [vmem:[%s3 + $0x10] sm:$0xff]
    %v53 = vld [vmem:[%s3 + $0x18] sm:$0xff]
    %v54 = vld [vmem:[%s4] sm:$0x1]
    %v56 = vlaneseq
    %v57 = vshrl.u32 %v56, 7
    %v58 = vsub.s32 0, %v57
    %v59 = vrot.slane %v54, %v58
    %v61 = vmul.f32 %v50, %v59
    %v62 = vmul.f32 %v51, %v59
    %v63 = vmul.f32 %v52, %v59
    %v64 = vmul.f32 %v53, %v59
    %v65 = vadd.f32 %v46, %v61
    %v66 = vadd.f32 %v47, %v62
    %v67 = vadd.f32 %v48, %v63
    %v68 = vadd.f32 %v49, %v64
    %v69 = vld [vmem:[%s5] sm:$0x1]
    %v71 = vlaneseq
    %v72 = vshrl.u32 %v71, 7
    %v73 = vsub.s32 0, %v72
    %v74 = vrot.slane %v69, %v73
    %v76 = vadd.f32 %v65, %v74
    %v77 = vadd.f32 %v66, %v74
    %v78 = vadd.f32 %v67, %v74
    %v79 = vadd.f32 %v68, %v74
    %v80 = vmax.f32 %v76, 0.0
    %v81 = vmax.f32 %v77, 0.0
    %v82 = vmax.f32 %v78, 0.0
    %v83 = vmax.f32 %v79, 0.0
    %vm84 = vcmask 261120
    %85 = vst.msk [vmem:[#allocation2] sm:$0xff] %vm84, %v80
    %86 = vst.msk [vmem:[#allocation2 + $0x8] sm:$0xff] %vm84, %v81
    %87 = vst.msk [vmem:[#allocation2 + $0x10] sm:$0xff] %vm84, %v82
    %88 = vst.msk [vmem:[#allocation2 + $0x18] sm:$0xff] %vm84, %v83
    // Predicated region
    $region26: #{block_forward.9} parent=1 // pred_check
      _
    $region27: #{block_forward.9} parent=1 // pred_check_branch
      %90 = sbr.rel (0) target = $region29
    $region28: #{block_forward.9} parent=1 // pred_region
      %s92 = ssub.s32 512, 512
      %93 = vsyncadd [#allocation3], %s92
      %s94 = sshll.u32 [#allocation2], 4
      %s95 = int_to_ptr.vmem [resolvable:$true] %s94
      %100 = dma.vmem_to_hbm [thread:$0]  %s95, 512, %s6, [#allocation3], 128, 128, 8
    $region29: #{block_forward.9} parent=1 // pred_fallthru
      _
    // Predicated region
    $region30: #{block_forward.9} parent=1 // pred_check
      _
    $region31: #{block_forward.9} parent=1 // pred_check_branch
      %102 = sbr.rel (0) target = $region33
    $region32: #{block_forward.9} parent=1 // pred_region
      %103 = dma.done [#allocation3], 512
    $region33: #{block_forward.9} parent=1 // pred_fallthru
      _
    %104 = vsyncpa [#allocation3], 1

</llo_original>
